<compile_context>
chip_gen: v7x
topology: tpu7x:2x2x1
jax: 0.10.0
libtpu: 0.0.40
codegen_flags: <defaults>
</compile_context>

<pallas_src>
import functools

import jax
import jax.numpy as jnp
import numpy as np
from jax.experimental import pallas as pl
from jax.experimental.pallas import tpu as pltpu


def _mha_kernel(xq_ref, xkv_ref, mask_ref, wq_ref, wk_ref, wv_ref, wfc_ref, g_ref, b_ref,
                out_ref, *rest, d_model, n_head, d_k, d_v, seq_len, tq,
                compute_dtype, return_attn, cache_kv):
    """One grid step == (batch b, query tile qi).

    xq_ref  : (1, tq, D) fp32   query rows of x (also the residual / LayerNorm path)
    xkv_ref : (1, S,  D) fp32   full sequence of x (K/V projections; block index is constant
                                across qi so Pallas re-DMAs it only when b changes)
    mask_ref: (1, tq, S) int8   != 0 => masked
    weights : pre-transposed (and pre-cast to compute_dtype) in the wrapper
    scratch : kh_sc (H, S, d_k), vh_sc (H, S, d_v) — per-batch K/V cache in compute dtype
    """
    if return_attn:
        attn_ref, kh_sc, vh_sc = rest
    else:
        attn_ref = None
        kh_sc, vh_sc = rest

    f32 = jnp.float32
    cd = compute_dtype
    bf16_math = jnp.dtype(cd) == jnp.dtype(jnp.bfloat16)

    # --- K/V projections + head-major relayout: once per batch (qi == 0) ---------------
    if cache_kv:
        refresh = pl.program_id(1) == 0
    else:
        refresh = pl.program_id(1) < pl.num_programs(1)   # every step (qi axis "parallel")

    @pl.when(refresh)
    def _():
        xkv = xkv_ref[0].astype(cd)                                           # (S, D)
        k = jnp.dot(xkv, wk_ref[...], preferred_element_type=f32)             # (S, H*dk)
        v = jnp.dot(xkv, wv_ref[...], preferred_element_type=f32)             # (S, H*dv)
        kh_sc[...] = jnp.transpose(k.reshape(seq_len, n_head, d_k),
                                   (1, 0, 2)).astype(kh_sc.dtype)             # (H, S, dk)
        vh_sc[...] = jnp.transpose(v.reshape(seq_len, n_head, d_v),
                                   (1, 0, 2)).astype(vh_sc.dtype)             # (H, S, dv)

    xq = xq_ref[0]                                                            # (tq, D) fp32
    mask = mask_ref[0]                                                        # (tq, S) int8

    # --- Q projection (scale folded into q, not the (tq,S) score matrix) ----------------
    scale = f32(1.0 / np.sqrt(d_model))
    q = jnp.dot(xq.astype(cd), wq_ref[...], preferred_element_type=f32) * scale
    qh = jnp.transpose(q.reshape(tq, n_head, d_k), (1, 0, 2))                 # (H, tq, dk)

    kh = kh_sc[...]                                                           # (H, S, dk) cd
    vh = vh_sc[...]                                                           # (H, S, dv) cd

    # --- scores + masked softmax, all heads batched --------------------------------------
    s = jnp.einsum('hqd,hkd->hqk', qh.astype(cd), kh,
                   preferred_element_type=f32)                                # (H, tq, S)
    s = jnp.where(mask[None, :, :] != 0, f32(-1e9), s)                        # masked_fill_
    s = s - jnp.max(s, axis=-1, keepdims=True)
    if bf16_math:
        e = jnp.exp(s.astype(jnp.bfloat16))            # packed bf16 EUP on v6e/v7x
        denom = jnp.sum(e, axis=-1, keepdims=True, dtype=f32)   # fp32 row-sum accumulation
        inv = pl.reciprocal(denom, approx=True)
    else:
        e = jnp.exp(s)
        denom = jnp.sum(e, axis=-1, keepdims=True)
        inv = pl.reciprocal(denom, approx=False)       # exact on the fp32 strict path
    p = e * inv                                        # (H, tq, S) fp32

    if attn_ref is not None:
        attn_ref[0] = p.astype(attn_ref.dtype)         # single contiguous (H, tq, S) store

    # --- context, output projection, residual, LayerNorm ---------------------------------
    ctx = jnp.einsum('hqk,hkd->hqd', p.astype(cd), vh,
                     preferred_element_type=f32)                              # (H, tq, dv)
    ctx2 = jnp.transpose(ctx, (1, 0, 2)).reshape(tq, n_head * d_v)            # (tq, H*dv)
    o = jnp.dot(ctx2.astype(cd), wfc_ref[...], preferred_element_type=f32)    # (tq, D)
    y = o + xq

    mu = jnp.mean(y, axis=-1, keepdims=True)
    yc = y - mu
    var = jnp.mean(yc * yc, axis=-1, keepdims=True)    # two-pass variance, no cancellation
    y_n = yc * jax.lax.rsqrt(var + 1e-5)
    out_ref[0] = (y_n * g_ref[0] + b_ref[0]).astype(out_ref.dtype)


def multi_head_attn(x, attn_mask, params, *, n_head, d_k, d_v,
                    q_tile=128, compute_dtype=jnp.bfloat16, attn_dtype=None,
                    return_attn=True, cache_kv=True,
                    vmem_limit_bytes=64 * 1024 * 1024):
    """x: [B, S, D] fp32; attn_mask: [B, S, S] bool (True = masked).

    q_tile guidance: ~512 on v6e (128 MiB VMEM), ~256 on v5e/v7x; here the default 128 keeps
    the (H, tq, S) fp32 slabs small.  For B == 1 on v7x, pass cache_kv=False to keep the
    query-tile axis "parallel" for 2-TC sharding.
    """
    B, S, D = x.shape
    tq = S if S <= q_tile else q_tile
    assert S % tq == 0, "seq_len must be a multiple of the query tile"
    n_qt = S // tq
    cache_kv = bool(cache_kv) and n_qt > 1              # nothing to cache with a single tile

    cd = compute_dtype
    if attn_dtype is None:
        attn_dtype = cd                                 # bf16 by default: halves attn writeback

    wq_t = params["W_q"].T.astype(cd)                   # (D, H*dk)
    wk_t = params["W_k"].T.astype(cd)
    wv_t = params["W_v"].T.astype(cd)
    wfc_t = params["fc"].T.astype(cd)                   # (H*dv, D)
    gamma = params["ln_gamma"].reshape(1, D).astype(jnp.float32)
    beta = params["ln_beta"].reshape(1, D).astype(jnp.float32)
    mask_i8 = attn_mask.astype(jnp.int8)                # 1 byte/elem mask DMA

    kernel = functools.partial(
        _mha_kernel, d_model=D, n_head=n_head, d_k=d_k, d_v=d_v, seq_len=S, tq=tq,
        compute_dtype=cd, return_attn=return_attn, cache_kv=cache_kv)

    out_shapes = [jax.ShapeDtypeStruct((B, S, D), jnp.float32)]
    out_specs = [pl.BlockSpec((1, tq, D), lambda b, qi: (b, qi, 0))]
    if return_attn:
        out_shapes.append(jax.ShapeDtypeStruct((B, n_head, S, S), attn_dtype))
        out_specs.append(pl.BlockSpec((1, n_head, tq, S), lambda b, qi: (b, 0, qi, 0)))

    in_specs = [
        pl.BlockSpec((1, tq, D), lambda b, qi: (b, qi, 0)),        # x (query rows / residual)
        pl.BlockSpec((1, S, D), lambda b, qi: (b, 0, 0)),          # x (full seq for K/V)
        pl.BlockSpec((1, tq, S), lambda b, qi: (b, qi, 0)),        # mask (int8)
        pl.BlockSpec((D, n_head * d_k), lambda b, qi: (0, 0)),     # W_q^T
        pl.BlockSpec((D, n_head * d_k), lambda b, qi: (0, 0)),     # W_k^T
        pl.BlockSpec((D, n_head * d_v), lambda b, qi: (0, 0)),     # W_v^T
        pl.BlockSpec((n_head * d_v, D), lambda b, qi: (0, 0)),     # fc^T
        pl.BlockSpec((1, D), lambda b, qi: (0, 0)),                # gamma
        pl.BlockSpec((1, D), lambda b, qi: (0, 0)),                # beta
    ]

    scratch_shapes = [
        pltpu.VMEM((n_head, S, d_k), cd),   # head-major K cache (per batch)
        pltpu.VMEM((n_head, S, d_v), cd),   # head-major V cache (per batch)
    ]

    # Advisory cost hint so XLA schedules surrounding ops sensibly around the exp-heavy call.
    attn_bytes = jnp.dtype(attn_dtype).itemsize if return_attn else 0
    w_bytes = jnp.dtype(cd).itemsize
    flops = int(2 * B * S * D * n_head * (2 * d_k + d_v)        # Q/K/V projections
                + 2 * B * S * (n_head * d_v) * D                # fc projection
                + 2 * B * n_head * S * S * (d_k + d_v))         # scores + context
    bytes_accessed = int(2 * B * S * D * 4 + B * S * S
                         + (3 * D * n_head * d_k + 2 * n_head * d_v * D) * w_bytes
                         + B * S * D * 4
                         + B * n_head * S * S * attn_bytes)
    cost = pl.CostEstimate(flops=flops, transcendentals=int(B * n_head * S * S),
                           bytes_accessed=bytes_accessed)

    results = pl.pallas_call(
        kernel,
        out_shape=tuple(out_shapes),
        grid_spec=pltpu.PrefetchScalarGridSpec(
            num_scalar_prefetch=0,
            grid=(B, n_qt),
            in_specs=in_specs,
            out_specs=out_specs,
            scratch_shapes=scratch_shapes,
        ),
        compiler_params=pltpu.CompilerParams(
            dimension_semantics=("parallel", "arbitrary" if cache_kv else "parallel"),
            vmem_limit_bytes=vmem_limit_bytes),
        cost_estimate=cost,
    )(x, x, mask_i8, wq_t, wk_t, wv_t, wfc_t, gamma, beta)

    if return_attn:
        return results[0], results[1]
    return results[0]


def _reference(x, attn_mask, params, *, n_head, d_k, d_v):
    """Pure-JAX fp32 reference mirroring the PyTorch module (eval mode)."""
    B, S, D = x.shape
    q = (x @ params["W_q"].T).reshape(B, S, n_head, d_k).transpose(0, 2, 1, 3)
    k = (x @ params["W_k"].T).reshape(B, S, n_head, d_k).transpose(0, 2, 1, 3)
    v = (x @ params["W_v"].T).reshape(B, S, n_head, d_v).transpose(0, 2, 1, 3)
    attn = jnp.einsum("bhqd,bhkd->bhqk", q, k) / np.sqrt(D)
    mask = attn_mask[:, None, :, :]
    attn = jnp.where(mask, -1e9, attn)
    attn = jax.nn.softmax(attn, axis=-1)
    ctx = jnp.einsum("bhqk,bhkd->bhqd", attn, v)
    ctx = ctx.transpose(0, 2, 1, 3).reshape(B, S, n_head * d_v)
    out = ctx @ params["fc"].T + x
    mu = out.mean(-1, keepdims=True)
    var = ((out - mu) ** 2).mean(-1, keepdims=True)
    out = (out - mu) / jnp.sqrt(var + 1e-5) * params["ln_gamma"] + params["ln_beta"]
    return out, attn


def _make_params(key, d_model, n_head, d_k, d_v):
    kq, kk, kv, kf = jax.random.split(key, 4)
    w_scale = 1.0 / np.sqrt(d_model)
    return {
        "W_q": jax.random.normal(kq, (n_head * d_k, d_model), jnp.float32) * w_scale,
        "W_k": jax.random.normal(kk, (n_head * d_k, d_model), jnp.float32) * w_scale,
        "W_v": jax.random.normal(kv, (n_head * d_v, d_model), jnp.float32) * w_scale,
        "fc": jax.random.normal(kf, (d_model, n_head * d_v), jnp.float32) * w_scale,
        "ln_gamma": jnp.ones((d_model,), jnp.float32),
        "ln_beta": jnp.zeros((d_model,), jnp.float32),
    }


if __name__ == "__main__":
    n_head, d_k, d_v = 4, 8, 8
    key = jax.random.PRNGKey(0)

    # ---- Config 1: module-sized shapes (single query tile, qi axis stays "parallel") ----
    B, S, D = 2, 8, 32
    k_x, k_m, k_p, key = jax.random.split(key, 4)
    x = jax.random.normal(k_x, (B, S, D), jnp.float32)
    attn_mask = jax.random.uniform(k_m, (B, S, S)) < 0.2       # True = masked
    params = _make_params(k_p, D, n_head, d_k, d_v)
    out_ref, attn_ref = _reference(x, attn_mask, params, n_head=n_head, d_k=d_k, d_v=d_v)

    # 1a) fp32-compute path: strict correctness check (exact reciprocal, fp32 exp).
    out32, attn32 = multi_head_attn(x, attn_mask, params, n_head=n_head, d_k=d_k, d_v=d_v,
                                    compute_dtype=jnp.float32)
    jax.block_until_ready((out32, attn32))
    np.testing.assert_allclose(np.asarray(out32), np.asarray(out_ref), rtol=5e-3, atol=5e-3)
    np.testing.assert_allclose(np.asarray(attn32), np.asarray(attn_ref), rtol=5e-3, atol=5e-3)

    # 1b) default bf16-MXU path (bf16 attn output): looser tolerance.
    out16, attn16 = multi_head_attn(x, attn_mask, params, n_head=n_head, d_k=d_k, d_v=d_v)
    jax.block_until_ready((out16, attn16))
    np.testing.assert_allclose(np.asarray(out16), np.asarray(out_ref), rtol=1e-1, atol=1e-1)
    np.testing.assert_allclose(np.asarray(attn16.astype(jnp.float32)), np.asarray(attn_ref),
                               rtol=5e-2, atol=2e-2)

    # ---- Config 2: multiple query tiles -> exercises the per-batch K/V VMEM cache -------
    B2, S2, D2 = 2, 64, 32
    k_x2, k_m2, k_p2, key = jax.random.split(key, 4)
    x2 = jax.random.normal(k_x2, (B2, S2, D2), jnp.float32)
    attn_mask2 = jax.random.uniform(k_m2, (B2, S2, S2)) < 0.2
    params2 = _make_params(k_p2, D2, n_head, d_k, d_v)
    out_ref2, attn_ref2 = _reference(x2, attn_mask2, params2, n_head=n_head, d_k=d_k, d_v=d_v)

    # 2a) fp32 strict check of the cached (arbitrary-qi) path.
    out32b, attn32b = multi_head_attn(x2, attn_mask2, params2, n_head=n_head, d_k=d_k, d_v=d_v,
                                      q_tile=32, compute_dtype=jnp.float32)
    jax.block_until_ready((out32b, attn32b))
    np.testing.assert_allclose(np.asarray(out32b), np.asarray(out_ref2), rtol=5e-3, atol=5e-3)
    np.testing.assert_allclose(np.asarray(attn32b), np.asarray(attn_ref2), rtol=5e-3, atol=5e-3)

    # 2b) bf16 out-only fast path (skips the O(S^2) attention-probability writeback).
    out_only = multi_head_attn(x2, attn_mask2, params2, n_head=n_head, d_k=d_k, d_v=d_v,
                               q_tile=32, return_attn=False)
    jax.block_until_ready(out_only)
    np.testing.assert_allclose(np.asarray(out_only), np.asarray(out_ref2), rtol=1e-1, atol=1e-1)

    print("KERNEL_OK")
</pallas_src>

<mosaic_0001>
module attributes {stable_mosaic.version = 11 : i64} {
  func.func @_mha_kernel(%arg0: i32, %arg1: i32, %arg2: memref<1x8x32xf32, #tpu.memory_space<vmem>>, %arg3: memref<1x8x32xf32, #tpu.memory_space<vmem>>, %arg4: memref<1x8x8xi8, #tpu.memory_space<vmem>>, %arg5: memref<32x32xf32, #tpu.memory_space<vmem>>, %arg6: memref<32x32xf32, #tpu.memory_space<vmem>>, %arg7: memref<32x32xf32, #tpu.memory_space<vmem>>, %arg8: memref<32x32xf32, #tpu.memory_space<vmem>>, %arg9: memref<1x32xf32, #tpu.memory_space<vmem>>, %arg10: memref<1x32xf32, #tpu.memory_space<vmem>>, %arg11: memref<1x8x32xf32, #tpu.memory_space<vmem>>, %arg12: memref<1x4x8x8xf32, #tpu.memory_space<vmem>>, %arg13: memref<4x8x8xf32, #tpu.memory_space<vmem>>, %arg14: memref<4x8x8xf32, #tpu.memory_space<vmem>>) attributes {dimension_semantics = [#tpu.dimension_semantics<parallel>, #tpu.dimension_semantics<parallel>], iteration_bounds = array<i64: 2, 1>, scalar_prefetch = 0 : i64, scratch_operands = 2 : i64, tpu.core_type = #tpu.core_type<tc>, window_params = [{transform_indices = @transform_0, window_bounds = array<i64: 1, 8, 32>}, {transform_indices = @transform_1, window_bounds = array<i64: 1, 8, 32>}, {transform_indices = @transform_2, window_bounds = array<i64: 1, 8, 8>}, {pipeline_mode = #tpu.pipeline_mode<synchronous>, transform_indices = @transform_3, window_bounds = array<i64: 32, 32>}, {pipeline_mode = #tpu.pipeline_mode<synchronous>, transform_indices = @transform_4, window_bounds = array<i64: 32, 32>}, {pipeline_mode = #tpu.pipeline_mode<synchronous>, transform_indices = @transform_5, window_bounds = array<i64: 32, 32>}, {pipeline_mode = #tpu.pipeline_mode<synchronous>, transform_indices = @transform_6, window_bounds = array<i64: 32, 32>}, {pipeline_mode = #tpu.pipeline_mode<synchronous>, transform_indices = @transform_7, window_bounds = array<i64: 1, 32>}, {pipeline_mode = #tpu.pipeline_mode<synchronous>, transform_indices = @transform_8, window_bounds = array<i64: 1, 32>}, {transform_indices = @transform_9, window_bounds = array<i64: 1, 8, 32>}, {transform_indices = @transform_10, window_bounds = array<i64: 1, 4, 8, 8>}]} {
    %c1_i32 = arith.constant 1 : i32
    %0 = arith.cmpi slt, %arg1, %c1_i32 : i32
    %1 = arith.extui %0 : i1 to i32
    %c0_i32 = arith.constant 0 : i32
    %2 = arith.cmpi ne, %1, %c0_i32 : i32
    scf.if %2 {
      %c0_38 = arith.constant 0 : index
      %c0_39 = arith.constant 0 : index
      %c0_40 = arith.constant 0 : index
      %71 = vector.load %arg3[%c0_38, %c0_39, %c0_40] : memref<1x8x32xf32, #tpu.memory_space<vmem>>, vector<1x8x32xf32>
      %72 = vector.shape_cast %71 : vector<1x8x32xf32> to vector<8x32xf32>
      %c0_41 = arith.constant 0 : index
      %c0_42 = arith.constant 0 : index
      %73 = vector.load %arg6[%c0_41, %c0_42] : memref<32x32xf32, #tpu.memory_space<vmem>>, vector<32x32xf32>
      %cst_43 = arith.constant dense<0.000000e+00> : vector<8x32xf32>
      %74 = tpu.matmul %72, %73, %cst_43 {dimension_numbers = #tpu.dot_dimension_numbers<[1], [0], [0], [1], [0, 0, 1, 1], [], []>} : vector<8x32xf32>, vector<32x32xf32>, vector<8x32xf32> -> vector<8x32xf32>
      %c0_44 = arith.constant 0 : index
      %c0_45 = arith.constant 0 : index
      %75 = vector.load %arg7[%c0_44, %c0_45] : memref<32x32xf32, #tpu.memory_space<vmem>>, vector<32x32xf32>
      %cst_46 = arith.constant dense<0.000000e+00> : vector<8x32xf32>
      %76 = tpu.matmul %72, %75, %cst_46 {dimension_numbers = #tpu.dot_dimension_numbers<[1], [0], [0], [1], [0, 0, 1, 1], [], []>} : vector<8x32xf32>, vector<32x32xf32>, vector<8x32xf32> -> vector<8x32xf32>
      %77 = vector.shape_cast %74 : vector<8x32xf32> to vector<8x4x8xf32>
      %78 = tpu.transpose %77, [1, 0, 2] : vector<8x4x8xf32> -> vector<4x8x8xf32>
      %c0_47 = arith.constant 0 : index
      %c0_48 = arith.constant 0 : index
      %c0_49 = arith.constant 0 : index
      %79 = vector.load %arg13[%c0_47, %c0_48, %c0_49] : memref<4x8x8xf32, #tpu.memory_space<vmem>>, vector<4x8x8xf32>
      tpu.vector_store %arg13[%c0_47, %c0_48, %c0_49], %78 {strides = array<i32>} : memref<4x8x8xf32, #tpu.memory_space<vmem>>, vector<4x8x8xf32>,
      %80 = vector.shape_cast %76 : vector<8x32xf32> to vector<8x4x8xf32>
      %81 = tpu.transpose %80, [1, 0, 2] : vector<8x4x8xf32> -> vector<4x8x8xf32>
      %c0_50 = arith.constant 0 : index
      %c0_51 = arith.constant 0 : index
      %c0_52 = arith.constant 0 : index
      %82 = vector.load %arg14[%c0_50, %c0_51, %c0_52] : memref<4x8x8xf32, #tpu.memory_space<vmem>>, vector<4x8x8xf32>
      tpu.vector_store %arg14[%c0_50, %c0_51, %c0_52], %81 {strides = array<i32>} : memref<4x8x8xf32, #tpu.memory_space<vmem>>, vector<4x8x8xf32>,
    } else {
    }
    %c0 = arith.constant 0 : index
    %c0_0 = arith.constant 0 : index
    %c0_1 = arith.constant 0 : index
    %3 = vector.load %arg2[%c0, %c0_0, %c0_1] : memref<1x8x32xf32, #tpu.memory_space<vmem>>, vector<1x8x32xf32>
    %4 = vector.shape_cast %3 : vector<1x8x32xf32> to vector<8x32xf32>
    %c0_2 = arith.constant 0 : index
    %c0_3 = arith.constant 0 : index
    %c0_4 = arith.constant 0 : index
    %5 = vector.load %arg4[%c0_2, %c0_3, %c0_4] : memref<1x8x8xi8, #tpu.memory_space<vmem>>, vector<1x8x8xi8>
    %6 = vector.shape_cast %5 : vector<1x8x8xi8> to vector<8x8xi8>
    %c0_5 = arith.constant 0 : index
    %c0_6 = arith.constant 0 : index
    %7 = vector.load %arg5[%c0_5, %c0_6] : memref<32x32xf32, #tpu.memory_space<vmem>>, vector<32x32xf32>
    %cst = arith.constant dense<0.000000e+00> : vector<8x32xf32>
    %8 = tpu.matmul %4, %7, %cst {dimension_numbers = #tpu.dot_dimension_numbers<[1], [0], [0], [1], [0, 0, 1, 1], [], []>} : vector<8x32xf32>, vector<32x32xf32>, vector<8x32xf32> -> vector<8x32xf32>
    %cst_7 = arith.constant 0.176776692 : f32
    %9 = vector.broadcast %cst_7 : f32 to vector<8x32xf32>
    %10 = arith.mulf %8, %9 : vector<8x32xf32>
    %11 = vector.shape_cast %10 : vector<8x32xf32> to vector<8x4x8xf32>
    %12 = tpu.transpose %11, [1, 0, 2] : vector<8x4x8xf32> -> vector<4x8x8xf32>
    %c0_8 = arith.constant 0 : index
    %c0_9 = arith.constant 0 : index
    %c0_10 = arith.constant 0 : index
    %13 = vector.load %arg13[%c0_8, %c0_9, %c0_10] : memref<4x8x8xf32, #tpu.memory_space<vmem>>, vector<4x8x8xf32>
    %c0_11 = arith.constant 0 : index
    %c0_12 = arith.constant 0 : index
    %c0_13 = arith.constant 0 : index
    %14 = vector.load %arg14[%c0_11, %c0_12, %c0_13] : memref<4x8x8xf32, #tpu.memory_space<vmem>>, vector<4x8x8xf32>
    "tpu.trace_start"() <{level = 10 : i32, message = "hqd,hkd->hqk"}> : () -> ()
    %cst_14 = arith.constant dense<0.000000e+00> : vector<4x8x8xf32>
    %15 = tpu.matmul %12, %13, %cst_14 {dimension_numbers = #tpu.dot_dimension_numbers<[2], [2], [1], [1], [0, 0, 0, 1, 1, 1], [0], [0]>} : vector<4x8x8xf32>, vector<4x8x8xf32>, vector<4x8x8xf32> -> vector<4x8x8xf32>
    "tpu.trace_stop"() : () -> ()
    %16 = vector.shape_cast %6 : vector<8x8xi8> to vector<1x8x8xi8>
    %c0_i8 = arith.constant 0 : i8
    %17 = vector.broadcast %c0_i8 : i8 to vector<1x8x8xi8>
    %18 = arith.cmpi ne, %16, %17 : vector<1x8x8xi8>
    %cst_15 = arith.constant -1.000000e+09 : f32
    %19 = vector.shape_cast %18 : vector<1x8x8xi1> to vector<1x8x8xi1>
    %20 = vector.broadcast %19 : vector<1x8x8xi1> to vector<4x8x8xi1>
    %21 = vector.broadcast %cst_15 : f32 to vector<4x8x8xf32>
    %22 = arith.select %20, %21, %15 : vector<4x8x8xi1>, vector<4x8x8xf32>
    %cst_16 = arith.constant dense<0xFF800000> : vector<4x8xf32>
    %23 = vector.multi_reduction <maximumf>, %22, %cst_16 [2] : vector<4x8x8xf32> to vector<4x8xf32>
    %24 = vector.shape_cast %23 : vector<4x8xf32> to vector<4x8x1xf32>
    %25 = vector.broadcast %24 : vector<4x8x1xf32> to vector<4x8x8xf32>
    %26 = arith.subf %22, %25 : vector<4x8x8xf32>
    %27 = math.exp %26 : vector<4x8x8xf32>
    %cst_17 = arith.constant dense<0.000000e+00> : vector<4x8xf32>
    %28 = vector.multi_reduction <add>, %27, %cst_17 [2] : vector<4x8x8xf32> to vector<4x8xf32>
    %29 = vector.shape_cast %28 : vector<4x8xf32> to vector<4x8x1xf32>
    %30 = tpu.reciprocal %29 : vector<4x8x1xf32> -> vector<4x8x1xf32>
    %31 = vector.broadcast %30 : vector<4x8x1xf32> to vector<4x8x8xf32>
    %32 = arith.mulf %27, %31 : vector<4x8x8xf32>
    %c0_18 = arith.constant 0 : index
    %c0_19 = arith.constant 0 : index
    %c0_20 = arith.constant 0 : index
    %c0_21 = arith.constant 0 : index
    %33 = vector.load %arg12[%c0_18, %c0_19, %c0_20, %c0_21] : memref<1x4x8x8xf32, #tpu.memory_space<vmem>>, vector<1x4x8x8xf32>
    %34 = vector.shape_cast %33 : vector<1x4x8x8xf32> to vector<4x8x8xf32>
    %35 = vector.shape_cast %32 : vector<4x8x8xf32> to vector<1x4x8x8xf32>
    tpu.vector_store %arg12[%c0_18, %c0_19, %c0_20, %c0_21], %35 {strides = array<i32>} : memref<1x4x8x8xf32, #tpu.memory_space<vmem>>, vector<1x4x8x8xf32>,
    "tpu.trace_start"() <{level = 10 : i32, message = "hqk,hkd->hqd"}> : () -> ()
    %cst_22 = arith.constant dense<0.000000e+00> : vector<4x8x8xf32>
    %36 = tpu.matmul %32, %14, %cst_22 {dimension_numbers = #tpu.dot_dimension_numbers<[2], [1], [1], [2], [0, 0, 0, 1, 1, 2], [0], [0]>} : vector<4x8x8xf32>, vector<4x8x8xf32>, vector<4x8x8xf32> -> vector<4x8x8xf32>
    "tpu.trace_stop"() : () -> ()
    %37 = tpu.transpose %36, [1, 0, 2] : vector<4x8x8xf32> -> vector<8x4x8xf32>
    %38 = vector.shape_cast %37 : vector<8x4x8xf32> to vector<8x32xf32>
    %c0_23 = arith.constant 0 : index
    %c0_24 = arith.constant 0 : index
    %39 = vector.load %arg8[%c0_23, %c0_24] : memref<32x32xf32, #tpu.memory_space<vmem>>, vector<32x32xf32>
    %cst_25 = arith.constant dense<0.000000e+00> : vector<8x32xf32>
    %40 = tpu.matmul %38, %39, %cst_25 {dimension_numbers = #tpu.dot_dimension_numbers<[1], [0], [0], [1], [0, 0, 1, 1], [], []>} : vector<8x32xf32>, vector<32x32xf32>, vector<8x32xf32> -> vector<8x32xf32>
    %41 = arith.addf %40, %4 : vector<8x32xf32>
    %cst_26 = arith.constant dense<0.000000e+00> : vector<8xf32>
    %42 = vector.multi_reduction <add>, %41, %cst_26 [1] : vector<8x32xf32> to vector<8xf32>
    %43 = vector.shape_cast %42 : vector<8xf32> to vector<8x1xf32>
    %cst_27 = arith.constant 3.200000e+01 : f32
    %44 = vector.broadcast %cst_27 : f32 to vector<8x1xf32>
    %45 = arith.divf %43, %44 : vector<8x1xf32>
    %46 = vector.broadcast %45 : vector<8x1xf32> to vector<8x32xf32>
    %47 = arith.subf %41, %46 : vector<8x32xf32>
    %48 = arith.mulf %47, %47 : vector<8x32xf32>
    %cst_28 = arith.constant dense<0.000000e+00> : vector<8xf32>
    %49 = vector.multi_reduction <add>, %48, %cst_28 [1] : vector<8x32xf32> to vector<8xf32>
    %50 = vector.shape_cast %49 : vector<8xf32> to vector<8x1xf32>
    %cst_29 = arith.constant 3.200000e+01 : f32
    %51 = vector.broadcast %cst_29 : f32 to vector<8x1xf32>
    %52 = arith.divf %50, %51 : vector<8x1xf32>
    %cst_30 = arith.constant 9.99999974E-6 : f32
    %53 = vector.broadcast %cst_30 : f32 to vector<8x1xf32>
    %54 = arith.addf %52, %53 : vector<8x1xf32>
    %55 = math.rsqrt %54 : vector<8x1xf32>
    %56 = vector.broadcast %55 : vector<8x1xf32> to vector<8x32xf32>
    %57 = arith.mulf %47, %56 : vector<8x32xf32>
    %c0_31 = arith.constant 0 : index
    %c0_32 = arith.constant 0 : index
    %58 = vector.load %arg9[%c0_31, %c0_32] : memref<1x32xf32, #tpu.memory_space<vmem>>, vector<1x32xf32>
    %59 = vector.shape_cast %58 : vector<1x32xf32> to vector<32xf32>
    %60 = vector.shape_cast %59 : vector<32xf32> to vector<1x32xf32>
    %61 = vector.broadcast %60 : vector<1x32xf32> to vector<8x32xf32>
    %62 = arith.mulf %57, %61 : vector<8x32xf32>
    %c0_33 = arith.constant 0 : index
    %c0_34 = arith.constant 0 : index
    %63 = vector.load %arg10[%c0_33, %c0_34] : memref<1x32xf32, #tpu.memory_space<vmem>>, vector<1x32xf32>
    %64 = vector.shape_cast %63 : vector<1x32xf32> to vector<32xf32>
    %65 = vector.shape_cast %64 : vector<32xf32> to vector<1x32xf32>
    %66 = vector.broadcast %65 : vector<1x32xf32> to vector<8x32xf32>
    %67 = arith.addf %62, %66 : vector<8x32xf32>
    %c0_35 = arith.constant 0 : index
    %c0_36 = arith.constant 0 : index
    %c0_37 = arith.constant 0 : index
    %68 = vector.load %arg11[%c0_35, %c0_36, %c0_37] : memref<1x8x32xf32, #tpu.memory_space<vmem>>, vector<1x8x32xf32>
    %69 = vector.shape_cast %68 : vector<1x8x32xf32> to vector<8x32xf32>
    %70 = vector.shape_cast %67 : vector<8x32xf32> to vector<1x8x32xf32>
    tpu.vector_store %arg11[%c0_35, %c0_36, %c0_37], %70 {strides = array<i32>} : memref<1x8x32xf32, #tpu.memory_space<vmem>>, vector<1x8x32xf32>,
    return
  }
  func.func @transform_0(%arg0: i32, %arg1: i32) -> (i32, i32, i32) {
    %c0_i32 = arith.constant 0 : i32
    %c0_i32_0 = arith.constant 0 : i32
    return %arg0, %arg1, %c0_i32 : i32, i32, i32
  }
  func.func @transform_1(%arg0: i32, %arg1: i32) -> (i32, i32, i32) {
    %c0_i32 = arith.constant 0 : i32
    %c0_i32_0 = arith.constant 0 : i32
    %c0_i32_1 = arith.constant 0 : i32
    return %arg0, %c0_i32, %c0_i32_0 : i32, i32, i32
  }
  func.func @transform_2(%arg0: i32, %arg1: i32) -> (i32, i32, i32) {
    %c0_i32 = arith.constant 0 : i32
    %c0_i32_0 = arith.constant 0 : i32
    return %arg0, %arg1, %c0_i32 : i32, i32, i32
  }
  func.func @transform_3(%arg0: i32, %arg1: i32) -> (i32, i32) {
    %c0_i32 = arith.constant 0 : i32
    %c0_i32_0 = arith.constant 0 : i32
    %c0_i32_1 = arith.constant 0 : i32
    return %c0_i32, %c0_i32_0 : i32, i32
  }
  func.func @transform_4(%arg0: i32, %arg1: i32) -> (i32, i32) {
    %c0_i32 = arith.constant 0 : i32
    %c0_i32_0 = arith.constant 0 : i32
    %c0_i32_1 = arith.constant 0 : i32
    return %c0_i32, %c0_i32_0 : i32, i32
  }
  func.func @transform_5(%arg0: i32, %arg1: i32) -> (i32, i32) {
    %c0_i32 = arith.constant 0 : i32
    %c0_i32_0 = arith.constant 0 : i32
    %c0_i32_1 = arith.constant 0 : i32
    return %c0_i32, %c0_i32_0 : i32, i32
  }
  func.func @transform_6(%arg0: i32, %arg1: i32) -> (i32, i32) {
    %c0_i32 = arith.constant 0 : i32
    %c0_i32_0 = arith.constant 0 : i32
    %c0_i32_1 = arith.constant 0 : i32
    return %c0_i32, %c0_i32_0 : i32, i32
  }
  func.func @transform_7(%arg0: i32, %arg1: i32) -> (i32, i32) {
    %c0_i32 = arith.constant 0 : i32
    %c0_i32_0 = arith.constant 0 : i32
    %c0_i32_1 = arith.constant 0 : i32
    return %c0_i32, %c0_i32_0 : i32, i32
  }
  func.func @transform_8(%arg0: i32, %arg1: i32) -> (i32, i32) {
    %c0_i32 = arith.constant 0 : i32
    %c0_i32_0 = arith.constant 0 : i32
    %c0_i32_1 = arith.constant 0 : i32
    return %c0_i32, %c0_i32_0 : i32, i32
  }
  func.func @transform_9(%arg0: i32, %arg1: i32) -> (i32, i32, i32) {
    %c0_i32 = arith.constant 0 : i32
    %c0_i32_0 = arith.constant 0 : i32
    return %arg0, %arg1, %c0_i32 : i32, i32, i32
  }
  func.func @transform_10(%arg0: i32, %arg1: i32) -> (i32, i32, i32, i32) {
    %c0_i32 = arith.constant 0 : i32
    %c0_i32_0 = arith.constant 0 : i32
    %c0_i32_1 = arith.constant 0 : i32
    return %arg0, %c0_i32, %arg1, %c0_i32_0 : i32, i32, i32, i32
  }
}

</mosaic_0001>

<llo_original>
// kernel: tpu_custom_call.1
$region0: #{tpu_custom_call.1}
  #allocation0 [shape = 'u32[]', space=smem, size = 0x4, offset = 0x4, fixed_abs, tag = 'smem constant byte address 0x4 - core index']
  #allocation1 [shape = 'u32[144,128]{1,0:T(1,128)}', space=vmem, size = 0x12000, scoped, tag = 'internal scratch']
  #allocation2 [shape = 'f32[4,8,8]{2,1,0:T(8,128)}', space=vmem, size = 0x4000, scoped, tag = 'scratch operand']
  #allocation3 [shape = 'f32[4,8,8]{2,1,0:T(8,128)}', space=vmem, size = 0x4000, scoped, tag = 'scratch operand']
  %s0 = inlined_call_operand.hbm [shape: f32[2,8,32], index: 0, kind: input, shape index: {}]
  %s1 = inlined_call_operand.hbm [shape: f32[2,8,32], index: 1, kind: input, shape index: {}]
  %s2 = inlined_call_operand.hbm [shape: s8[2,8,8], index: 2, kind: input, shape index: {}]
  %s3 = inlined_call_operand.hbm [shape: f32[32,32], index: 3, kind: input, shape index: {}]
  %s4 = inlined_call_operand.hbm [shape: f32[32,32], index: 4, kind: input, shape index: {}]
  %s5 = inlined_call_operand.hbm [shape: f32[32,32], index: 5, kind: input, shape index: {}]
  %s6 = inlined_call_operand.hbm [shape: f32[32,32], index: 6, kind: input, shape index: {}]
  %s7 = inlined_call_operand.hbm [shape: f32[1,32], index: 7, kind: input, shape index: {}]
  %s8 = inlined_call_operand.hbm [shape: f32[1,32], index: 8, kind: input, shape index: {}]
  %s9 = inlined_call_operand.hbm [shape: f32[2,8,32], index: 9, kind: output, shape index: {0}]
  %s10 = inlined_call_operand.hbm [shape: f32[2,4,8,8], index: 10, kind: output, shape index: {1}]
  %11 = xla_tuple %s9, %s10
  %s12 = sld [smem:[#allocation0]]
  $region117: #{tpu_custom_call.1} parent=0
    _
  %s14 = ssub.s32 1, %s12
  %s15 = scalar_select 0, %s14, %s12
  $region1: #{tpu_custom_call.1} parent=0
    #allocation4 [shape = 'u8[8192]{0}', space=vmem, size = 0x2000, scoped, tag = 'input window, operand 0']
    #allocation5 [shape = 's32[2]{0}', space=sflag, size = 0x8, scoped, tag = 'scoped memory for tpu_custom_call.1']
    #allocation6 [shape = 's32[2]{0}', space=sflag, size = 0x8, scoped, tag = 'scoped memory for tpu_custom_call.1']
    #allocation7 [shape = 'u8[8192]{0}', space=vmem, size = 0x2000, scoped, tag = 'input window, operand 1']
    #allocation8 [shape = 's32[2]{0}', space=sflag, size = 0x8, scoped, tag = 'scoped memory for tpu_custom_call.1']
    #allocation9 [shape = 'u8[2048]{0}', space=vmem, size = 0x800, scoped, tag = 'input window, operand 2']
    #allocation10 [shape = 'u8[16384]{0}', space=vmem, size = 0x4000, scoped, tag = 'input window, operand 3, single buffered']
    #allocation11 [shape = 's32[1]{0}', space=sflag, size = 0x4, scoped, tag = 'scoped memory for tpu_custom_call.1']
    #allocation12 [shape = 'u8[16384]{0}', space=vmem, size = 0x4000, scoped, tag = 'input window, operand 4, single buffered']
    #allocation13 [shape = 'u8[16384]{0}', space=vmem, size = 0x4000, scoped, tag = 'input window, operand 5, single buffered']
    #allocation14 [shape = 's32[1]{0}', space=sflag, size = 0x4, scoped, tag = 'scoped memory for tpu_custom_call.1']
    #allocation15 [shape = 'u8[16384]{0}', space=vmem, size = 0x4000, scoped, tag = 'input window, operand 6, single buffered']
    #allocation16 [shape = 'u8[512]{0}', space=vmem, size = 0x400, scoped, tag = 'input window, operand 7, single buffered']
    #allocation17 [shape = 's32[1]{0}', space=sflag, size = 0x4, scoped, tag = 'scoped memory for tpu_custom_call.1']
    #allocation18 [shape = 'u8[512]{0}', space=vmem, size = 0x400, scoped, tag = 'input window, operand 8, single buffered']
    #allocation19 [shape = 'u8[8192]{0}', space=vmem, size = 0x2000, scoped, tag = 'output window, operand 0']
    #allocation20 [shape = 'u8[32768]{0}', space=vmem, size = 0x8000, scoped, tag = 'output window, operand 1']
    #allocation21 [shape = 's32[2]{0}', space=sflag, size = 0x8, scoped, tag = 'scoped memory for tpu_custom_call.1']
    %16 = vsyncpa [#allocation5], 0
    %s17 = scalar_lea.sflag [#allocation5], 1
    %18 = vsyncpa %s17, 0
    %19 = vsyncpa [#allocation8], 0
    %s20 = scalar_lea.sflag [#allocation8], 1
    %21 = vsyncpa %s20, 0
    %22 = vsyncpa [#allocation11], 0
    %23 = vsyncpa [#allocation14], 0
    %24 = vsyncpa [#allocation17], 0
    %25 = vsyncpa [#allocation6], 0
    %s26 = scalar_lea.sflag [#allocation6], 1
    %27 = vsyncpa %s26, 0
    %28 = vsyncpa [#allocation21], 0
    %s29 = scalar_lea.sflag [#allocation21], 1
    %30 = vsyncpa %s29, 0
    loop: start=0, step=1, limit=4
    $region2: #{tpu_custom_call.1} parent=1 // loop_pre_header
      _
    $region3: #{tpu_custom_call.1} parent=1 // loop_header
      %s32 = sphi 0, %s36
      %p33 = scmp.ge.s32.totalorder %s32, 4
      %s39 = sphi 0, %s51
      %s40 = sphi 0, %s47
      %s41 = sphi 0, %s39
      %s42 = sphi 0, %s40
      %s43 = sphi 0, %s41
      %s44 = sphi 0, %s42
      %s56 = sphi 0, %s58
      %s59 = sphi 0, %s56
      %s60 = sphi 0, %s59
      %s76 = sphi 0, %s60
      %s82 = sphi 0, %s84
      %s85 = sphi 0, %s82
      %s86 = sphi 0, %s85
      %s102 = sphi 0, %s86
      %s110 = sphi 0, %s112
      %s113 = sphi 0, %s110
      %s114 = sphi 0, %s113
      %s130 = sphi 0, %s114
      %s134 = sphi 0, %s134
      %s136 = sphi 0, %s134
      %s137 = sphi 0, %s136
      %s151 = sphi 0, %s137
      %s155 = sphi 0, %s155
      %s157 = sphi 0, %s155
      %s158 = sphi 0, %s157
      %s172 = sphi 0, %s158
      %s176 = sphi 0, %s176
      %s178 = sphi 0, %s176
      %s179 = sphi 0, %s178
      %s193 = sphi 0, %s179
      %s197 = sphi 0, %s197
      %s199 = sphi 0, %s197
      %s200 = sphi 0, %s199
      %s214 = sphi 0, %s200
      %s218 = sphi 0, %s218
      %s220 = sphi 0, %s218
      %s221 = sphi 0, %s220
      %s235 = sphi 0, %s221
      %s239 = sphi 0, %s239
      %s241 = sphi 0, %s239
      %s242 = sphi 0, %s241
      %s256 = sphi 0, %s242
      %s264 = sphi 0, %s266
      %s267 = sphi 0, %s264
      %s268 = sphi 0, %s267
      %s284 = sphi 0, %s268
      %s292 = sphi 0, %s294
      %s295 = sphi 0, %s292
      %s296 = sphi 0, %s295
      %s312 = sphi 0, %s296
    $region4: #{tpu_custom_call.1} parent=1 // loop_header_branch
      %35 = sbr.rel (%p33) target = $region8
    $region5: #{tpu_custom_call.1} parent=1 // loop_body
      %s37 = ssub.s32 %s32, 1
      %s38 = ssub.s32 %s32, 2
      %s45 = sadd.s32 1, %s40
      %p46 = scmp.ge.s32.totalorder %s45, 1
      %s47 = scalar_select %p46, 0, %s45
      %s48 = sadd.s32 1, %s39
      %s49 = scalar_select %p46, %s48, %s39
      %p50 = scmp.ge.s32.totalorder %s49, 2
      %s51 = scalar_select %p50, 0, %s49
      %s52 = ssub.s32 %s39, %s51
      %s53 = ssub.s32 %s40, %s47
      %s54 = sor.u32 %s52, %s53
      %p55 = scmp.eq.s32.totalorder %s54, 0
      %s57 = sadd.s32 %s56, 1
      %s58 = scalar_select %p55, %s56, %s57
      %p61 = pneg %p55
      %p62 = scmp.eq.s32.totalorder %s32, 1
      %p63 = por %p61, %p62
      %p64 = scmp.ne.s32.totalorder %s56, %s59
      %p65 = scmp.eq.s32.totalorder %s32, 0
      %p66 = por %p64, %p65
      %p67 = scmp.ne.s32.totalorder %s56, %s59
      %p68 = scmp.eq.s32.totalorder %s37, 1
      %p69 = por %p67, %p68
      %p70 = scmp.ne.s32.totalorder %s59, %s60
      %p71 = scmp.eq.s32.totalorder %s37, 0
      %p72 = por %p70, %p71
      %p73 = scmp.ne.s32.totalorder %s59, %s60
      %p74 = scmp.eq.s32.totalorder %s38, 1
      %p75 = por %p73, %p74
      %p77 = scmp.ne.s32.totalorder %s60, %s76
      %p78 = scmp.eq.s32.totalorder %s38, 0
      %p79 = por %p77, %p78
      %s80 = ssub.s32 %s39, %s51
      %p81 = scmp.eq.s32.totalorder %s80, 0
      %s83 = sadd.s32 %s82, 1
      %s84 = scalar_select %p81, %s82, %s83
      %p87 = pneg %p81
      %p88 = scmp.eq.s32.totalorder %s32, 1
      %p89 = por %p87, %p88
      %p90 = scmp.ne.s32.totalorder %s82, %s85
      %p91 = scmp.eq.s32.totalorder %s32, 0
      %p92 = por %p90, %p91
      %p93 = scmp.ne.s32.totalorder %s82, %s85
      %p94 = scmp.eq.s32.totalorder %s37, 1
      %p95 = por %p93, %p94
      %p96 = scmp.ne.s32.totalorder %s85, %s86
      %p97 = scmp.eq.s32.totalorder %s37, 0
      %p98 = por %p96, %p97
      %p99 = scmp.ne.s32.totalorder %s85, %s86
      %p100 = scmp.eq.s32.totalorder %s38, 1
      %p101 = por %p99, %p100
      %p103 = scmp.ne.s32.totalorder %s86, %s102
      %p104 = scmp.eq.s32.totalorder %s38, 0
      %p105 = por %p103, %p104
      %s106 = ssub.s32 %s39, %s51
      %s107 = ssub.s32 %s40, %s47
      %s108 = sor.u32 %s106, %s107
      %p109 = scmp.eq.s32.totalorder %s108, 0
      %s111 = sadd.s32 %s110, 1
      %s112 = scalar_select %p109, %s110, %s111
      %p115 = pneg %p109
      %p116 = scmp.eq.s32.totalorder %s32, 1
      %p117 = por %p115, %p116
      %p118 = scmp.ne.s32.totalorder %s110, %s113
      %p119 = scmp.eq.s32.totalorder %s32, 0
      %p120 = por %p118, %p119
      %p121 = scmp.ne.s32.totalorder %s110, %s113
      %p122 = scmp.eq.s32.totalorder %s37, 1
      %p123 = por %p121, %p122
      %p124 = scmp.ne.s32.totalorder %s113, %s114
      %p125 = scmp.eq.s32.totalorder %s37, 0
      %p126 = por %p124, %p125
      %p127 = scmp.ne.s32.totalorder %s113, %s114
      %p128 = scmp.eq.s32.totalorder %s38, 1
      %p129 = por %p127, %p128
      %p131 = scmp.ne.s32.totalorder %s114, %s130
      %p132 = scmp.eq.s32.totalorder %s38, 0
      %p133 = por %p131, %p132
      %s135 = sadd.s32 %s134, 1
      %p138 = scmp.eq.s32.totalorder %s32, 1
      %p139 = scmp.ne.s32.totalorder %s134, %s136
      %p140 = scmp.eq.s32.totalorder %s32, 0
      %p141 = por %p139, %p140
      %p142 = scmp.ne.s32.totalorder %s134, %s136
      %p143 = scmp.eq.s32.totalorder %s37, 1
      %p144 = por %p142, %p143
      %p145 = scmp.ne.s32.totalorder %s136, %s137
      %p146 = scmp.eq.s32.totalorder %s37, 0
      %p147 = por %p145, %p146
      %p148 = scmp.ne.s32.totalorder %s136, %s137
      %p149 = scmp.eq.s32.totalorder %s38, 1
      %p150 = por %p148, %p149
      %p152 = scmp.ne.s32.totalorder %s137, %s151
      %p153 = scmp.eq.s32.totalorder %s38, 0
      %p154 = por %p152, %p153
      %s156 = sadd.s32 %s155, 1
      %p159 = scmp.eq.s32.totalorder %s32, 1
      %p160 = scmp.ne.s32.totalorder %s155, %s157
      %p161 = scmp.eq.s32.totalorder %s32, 0
      %p162 = por %p160, %p161
      %p163 = scmp.ne.s32.totalorder %s155, %s157
      %p164 = scmp.eq.s32.totalorder %s37, 1
      %p165 = por %p163, %p164
      %p166 = scmp.ne.s32.totalorder %s157, %s158
      %p167 = scmp.eq.s32.totalorder %s37, 0
      %p168 = por %p166, %p167
      %p169 = scmp.ne.s32.totalorder %s157, %s158
      %p170 = scmp.eq.s32.totalorder %s38, 1
      %p171 = por %p169, %p170
      %p173 = scmp.ne.s32.totalorder %s158, %s172
      %p174 = scmp.eq.s32.totalorder %s38, 0
      %p175 = por %p173, %p174
      %s177 = sadd.s32 %s176, 1
      %p180 = scmp.eq.s32.totalorder %s32, 1
      %p181 = scmp.ne.s32.totalorder %s176, %s178
      %p182 = scmp.eq.s32.totalorder %s32, 0
      %p183 = por %p181, %p182
      %p184 = scmp.ne.s32.totalorder %s176, %s178
      %p185 = scmp.eq.s32.totalorder %s37, 1
      %p186 = por %p184, %p185
      %p187 = scmp.ne.s32.totalorder %s178, %s179
      %p188 = scmp.eq.s32.totalorder %s37, 0
      %p189 = por %p187, %p188
      %p190 = scmp.ne.s32.totalorder %s178, %s179
      %p191 = scmp.eq.s32.totalorder %s38, 1
      %p192 = por %p190, %p191
      %p194 = scmp.ne.s32.totalorder %s179, %s193
      %p195 = scmp.eq.s32.totalorder %s38, 0
      %p196 = por %p194, %p195
      %s198 = sadd.s32 %s197, 1
      %p201 = scmp.eq.s32.totalorder %s32, 1
      %p202 = scmp.ne.s32.totalorder %s197, %s199
      %p203 = scmp.eq.s32.totalorder %s32, 0
      %p204 = por %p202, %p203
      %p205 = scmp.ne.s32.totalorder %s197, %s199
      %p206 = scmp.eq.s32.totalorder %s37, 1
      %p207 = por %p205, %p206
      %p208 = scmp.ne.s32.totalorder %s199, %s200
      %p209 = scmp.eq.s32.totalorder %s37, 0
      %p210 = por %p208, %p209
      %p211 = scmp.ne.s32.totalorder %s199, %s200
      %p212 = scmp.eq.s32.totalorder %s38, 1
      %p213 = por %p211, %p212
      %p215 = scmp.ne.s32.totalorder %s200, %s214
      %p216 = scmp.eq.s32.totalorder %s38, 0
      %p217 = por %p215, %p216
      %s219 = sadd.s32 %s218, 1
      %p222 = scmp.eq.s32.totalorder %s32, 1
      %p223 = scmp.ne.s32.totalorder %s218, %s220
      %p224 = scmp.eq.s32.totalorder %s32, 0
      %p225 = por %p223, %p224
      %p226 = scmp.ne.s32.totalorder %s218, %s220
      %p227 = scmp.eq.s32.totalorder %s37, 1
      %p228 = por %p226, %p227
      %p229 = scmp.ne.s32.totalorder %s220, %s221
      %p230 = scmp.eq.s32.totalorder %s37, 0
      %p231 = por %p229, %p230
      %p232 = scmp.ne.s32.totalorder %s220, %s221
      %p233 = scmp.eq.s32.totalorder %s38, 1
      %p234 = por %p232, %p233
      %p236 = scmp.ne.s32.totalorder %s221, %s235
      %p237 = scmp.eq.s32.totalorder %s38, 0
      %p238 = por %p236, %p237
      %s240 = sadd.s32 %s239, 1
      %p243 = scmp.eq.s32.totalorder %s32, 1
      %p244 = scmp.ne.s32.totalorder %s239, %s241
      %p245 = scmp.eq.s32.totalorder %s32, 0
      %p246 = por %p244, %p245
      %p247 = scmp.ne.s32.totalorder %s239, %s241
      %p248 = scmp.eq.s32.totalorder %s37, 1
      %p249 = por %p247, %p248
      %p250 = scmp.ne.s32.totalorder %s241, %s242
      %p251 = scmp.eq.s32.totalorder %s37, 0
      %p252 = por %p250, %p251
      %p253 = scmp.ne.s32.totalorder %s241, %s242
      %p254 = scmp.eq.s32.totalorder %s38, 1
      %p255 = por %p253, %p254
      %p257 = scmp.ne.s32.totalorder %s242, %s256
      %p258 = scmp.eq.s32.totalorder %s38, 0
      %p259 = por %p257, %p258
      %s260 = ssub.s32 %s39, %s51
      %s261 = ssub.s32 %s40, %s47
      %s262 = sor.u32 %s260, %s261
      %p263 = scmp.eq.s32.totalorder %s262, 0
      %s265 = sadd.s32 %s264, 1
      %s266 = scalar_select %p263, %s264, %s265
      %p269 = pneg %p263
      %p270 = scmp.eq.s32.totalorder %s32, 1
      %p271 = por %p269, %p270
      %p272 = scmp.ne.s32.totalorder %s264, %s267
      %p273 = scmp.eq.s32.totalorder %s32, 0
      %p274 = por %p272, %p273
      %p275 = scmp.ne.s32.totalorder %s264, %s267
      %p276 = scmp.eq.s32.totalorder %s37, 1
      %p277 = por %p275, %p276
      %p278 = scmp.ne.s32.totalorder %s267, %s268
      %p279 = scmp.eq.s32.totalorder %s37, 0
      %p280 = por %p278, %p279
      %p281 = scmp.ne.s32.totalorder %s267, %s268
      %p282 = scmp.eq.s32.totalorder %s38, 1
      %p283 = por %p281, %p282
      %p285 = scmp.ne.s32.totalorder %s268, %s284
      %p286 = scmp.eq.s32.totalorder %s38, 0
      %p287 = por %p285, %p286
      %s288 = ssub.s32 %s39, %s51
      %s289 = ssub.s32 %s40, %s47
      %s290 = sor.u32 %s288, %s289
      %p291 = scmp.eq.s32.totalorder %s290, 0
      %s293 = sadd.s32 %s292, 1
      %s294 = scalar_select %p291, %s292, %s293
      %p297 = pneg %p291
      %p298 = scmp.eq.s32.totalorder %s32, 1
      %p299 = por %p297, %p298
      %p300 = scmp.ne.s32.totalorder %s292, %s295
      %p301 = scmp.eq.s32.totalorder %s32, 0
      %p302 = por %p300, %p301
      %p303 = scmp.ne.s32.totalorder %s292, %s295
      %p304 = scmp.eq.s32.totalorder %s37, 1
      %p305 = por %p303, %p304
      %p306 = scmp.ne.s32.totalorder %s295, %s296
      %p307 = scmp.eq.s32.totalorder %s37, 0
      %p308 = por %p306, %p307
      %p309 = scmp.ne.s32.totalorder %s295, %s296
      %p310 = scmp.eq.s32.totalorder %s38, 1
      %p311 = por %p309, %p310
      %p313 = scmp.ne.s32.totalorder %s296, %s312
      %p314 = scmp.eq.s32.totalorder %s38, 0
      %p315 = por %p313, %p314
      %p316 = scmp.le.s32.totalorder 1, %s32
      %p317 = scmp.lt.s32.totalorder %s32, 3
      %p318 = pnand %p316, %p317
      %p319 = pneg %p318
      // Predicated region
      $region9: #{tpu_custom_call.1} parent=5 // pred_check
        _
      $region10: #{tpu_custom_call.1} parent=5 // pred_check_branch
        %321 = sbr.rel (%p318) target = $region12
      $region11: #{tpu_custom_call.1} parent=5 // pred_region
        %s322 = ssub.s32 %s32, 1
        // Predicated region
        $region13: #{tpu_custom_call.1} parent=11 // pred_check
          %p323 = pneg %p147
        $region14: #{tpu_custom_call.1} parent=11 // pred_check_branch
          %325 = sbr.rel (%p323) target = $region16
        $region15: #{tpu_custom_call.1} parent=11 // pred_region
          %s327 = ssub.s32 512, 512
          %328 = vsyncadd [#allocation11], %s327
          %s329 = sshll.u32 [#allocation10], 4
          %s330 = int_to_ptr.vmem [resolvable:$true] %s329
          %335 = dma.hbm_to_vmem [thread:$0]  %s3, 512, %s330, [#allocation11], 128, 128, 8
        $region16: #{tpu_custom_call.1} parent=11 // pred_fallthru
          _
        // Predicated region
        $region17: #{tpu_custom_call.1} parent=11 // pred_check
          %p336 = pneg %p168
        $region18: #{tpu_custom_call.1} parent=11 // pred_check_branch
          %338 = sbr.rel (%p336) target = $region20
        $region19: #{tpu_custom_call.1} parent=11 // pred_region
          %s340 = ssub.s32 512, 512
          %341 = vsyncadd [#allocation11], %s340
          %s342 = sshll.u32 [#allocation12], 4
          %s343 = int_to_ptr.vmem [resolvable:$true] %s342
          %348 = dma.hbm_to_vmem [thread:$0]  %s4, 512, %s343, [#allocation11], 128, 128, 8
        $region20: #{tpu_custom_call.1} parent=11 // pred_fallthru
          _
        // Predicated region
        $region21: #{tpu_custom_call.1} parent=11 // pred_check
          %p349 = pneg %p189
        $region22: #{tpu_custom_call.1} parent=11 // pred_check_branch
          %351 = sbr.rel (%p349) target = $region24
        $region23: #{tpu_custom_call.1} parent=11 // pred_region
          %s353 = ssub.s32 512, 512
          %354 = vsyncadd [#allocation14], %s353
          %s355 = sshll.u32 [#allocation13], 4
          %s356 = int_to_ptr.vmem [resolvable:$true] %s355
          %361 = dma.hbm_to_vmem [thread:$0]  %s5, 512, %s356, [#allocation14], 128, 128, 8
        $region24: #{tpu_custom_call.1} parent=11 // pred_fallthru
          _
        // Predicated region
        $region25: #{tpu_custom_call.1} parent=11 // pred_check
          %p362 = pneg %p210
        $region26: #{tpu_custom_call.1} parent=11 // pred_check_branch
          %364 = sbr.rel (%p362) target = $region28
        $region27: #{tpu_custom_call.1} parent=11 // pred_region
          %s366 = ssub.s32 512, 512
          %367 = vsyncadd [#allocation14], %s366
          %s368 = sshll.u32 [#allocation15], 4
          %s369 = int_to_ptr.vmem [resolvable:$true] %s368
          %374 = dma.hbm_to_vmem [thread:$0]  %s6, 512, %s369, [#allocation14], 128, 128, 8
        $region28: #{tpu_custom_call.1} parent=11 // pred_fallthru
          _
        // Predicated region
        $region29: #{tpu_custom_call.1} parent=11 // pred_check
          %p375 = pneg %p231
        $region30: #{tpu_custom_call.1} parent=11 // pred_check_branch
          %377 = sbr.rel (%p375) target = $region32
        $region31: #{tpu_custom_call.1} parent=11 // pred_region
          %s379 = ssub.s32 16, 16
          %380 = vsyncadd [#allocation17], %s379
          %s382 = sshll.u32 [#allocation16], 4
          %s383 = int_to_ptr.vmem [resolvable:$true] %s382
          %385 = dma.hbm_to_vmem [thread:$0]  %s7, 16, %s383, [#allocation17]
        $region32: #{tpu_custom_call.1} parent=11 // pred_fallthru
          _
        // Predicated region
        $region33: #{tpu_custom_call.1} parent=11 // pred_check
          %p386 = pneg %p252
        $region34: #{tpu_custom_call.1} parent=11 // pred_check_branch
          %388 = sbr.rel (%p386) target = $region36
        $region35: #{tpu_custom_call.1} parent=11 // pred_region
          %s390 = ssub.s32 16, 16
          %391 = vsyncadd [#allocation17], %s390
          %s393 = sshll.u32 [#allocation18], 4
          %s394 = int_to_ptr.vmem [resolvable:$true] %s393
          %396 = dma.hbm_to_vmem [thread:$0]  %s8, 16, %s394, [#allocation17]
        $region36: #{tpu_custom_call.1} parent=11 // pred_fallthru
          _
      $region12: #{tpu_custom_call.1} parent=5 // pred_fallthru
        _
      %p397 = scmp.lt.s32.totalorder %s32, 2
      // Predicated region
      $region37: #{tpu_custom_call.1} parent=5 // pred_check
        %p398 = pneg %p397
      $region38: #{tpu_custom_call.1} parent=5 // pred_check_branch
        %400 = sbr.rel (%p398) target = $region40
      $region39: #{tpu_custom_call.1} parent=5 // pred_region
        // Predicated region
        $region41: #{tpu_custom_call.1} parent=39 // pred_check
          %p401 = pneg %p66
        $region42: #{tpu_custom_call.1} parent=39 // pred_check_branch
          %403 = sbr.rel (%p401) target = $region44
        $region43: #{tpu_custom_call.1} parent=39 // pred_region
          %s404 = sand.u32 %s56, 1
          %s405 = scalar_lea.sflag [#allocation5], %s404
          %s406 = sand.u32 %s56, 1
          %s407 = smul.addr %s406, 8
          %s408 = scalar_lea.vmem [#allocation4], %s407
          %s410 = ssub.s32 128, 128
          %411 = vsyncadd %s405, %s410
          %s412 = sadd.s32 %s40, %s39
          %s413 = smul.addr %s412, 128
          %s414 = scalar_lea.hbm %s0, %s413
          %s416 = sshll.u32 %s408, 4
          %s417 = int_to_ptr.vmem [resolvable:$true] %s416
          %419 = dma.hbm_to_vmem [thread:$0]  %s414, 128, %s417, %s405
        $region44: #{tpu_custom_call.1} parent=39 // pred_fallthru
          _
        // Predicated region
        $region45: #{tpu_custom_call.1} parent=39 // pred_check
          %p420 = pneg %p92
        $region46: #{tpu_custom_call.1} parent=39 // pred_check_branch
          %422 = sbr.rel (%p420) target = $region48
        $region47: #{tpu_custom_call.1} parent=39 // pred_region
          %s423 = sand.u32 %s32, 1
          %s424 = scalar_lea.sflag [#allocation8], %s423
          %s425 = sand.u32 %s82, 1
          %s426 = smul.addr %s425, 8
          %s427 = scalar_lea.vmem [#allocation7], %s426
          %s429 = ssub.s32 128, 128
          %430 = vsyncadd %s424, %s429
          %s431 = smul.addr %s39, 128
          %s432 = scalar_lea.hbm %s1, %s431
          %s434 = sshll.u32 %s427, 4
          %s435 = int_to_ptr.vmem [resolvable:$true] %s434
          %437 = dma.hbm_to_vmem [thread:$0]  %s432, 128, %s435, %s424
        $region48: #{tpu_custom_call.1} parent=39 // pred_fallthru
          _
        // Predicated region
        $region49: #{tpu_custom_call.1} parent=39 // pred_check
          %p438 = pneg %p120
        $region50: #{tpu_custom_call.1} parent=39 // pred_check_branch
          %440 = sbr.rel (%p438) target = $region52
        $region51: #{tpu_custom_call.1} parent=39 // pred_region
          %s441 = sand.u32 %s32, 1
          %s442 = scalar_lea.sflag [#allocation8], %s441
          %s443 = sand.u32 %s110, 1
          %s444 = smul.addr %s443, 2
          %s445 = scalar_lea.vmem [#allocation9], %s444
          %s447 = ssub.s32 32, 32
          %448 = vsyncadd %s442, %s447
          %s449 = sadd.s32 %s40, %s39
          %s450 = smul.addr %s449, 32
          %s451 = scalar_lea.hbm %s2, %s450
          %s453 = sshll.u32 %s445, 4
          %s454 = int_to_ptr.vmem [resolvable:$true] %s453
          %456 = dma.hbm_to_vmem [thread:$0]  %s451, 32, %s454, %s442
        $region52: #{tpu_custom_call.1} parent=39 // pred_fallthru
          _
      $region40: #{tpu_custom_call.1} parent=5 // pred_fallthru
        _
      %p457 = scmp.le.s32.totalorder 1, %s32
      %p458 = scmp.lt.s32.totalorder %s32, 3
      %p459 = pnand %p457, %p458
      %p460 = pneg %p459
      // Predicated region
      $region53: #{tpu_custom_call.1} parent=5 // pred_check
        _
      $region54: #{tpu_custom_call.1} parent=5 // pred_check_branch
        %462 = sbr.rel (%p459) target = $region56
      $region55: #{tpu_custom_call.1} parent=5 // pred_region
        %s463 = ssub.s32 %s32, 1
        %s464 = sand.u32 %s59, 1
        %s465 = scalar_lea.sflag [#allocation5], %s464
        %s466 = sand.u32 %s59, 1
        %s467 = smul.addr %s466, 8
        %s468 = scalar_lea.vmem [#allocation4], %s467
        // Predicated region
        $region57: #{tpu_custom_call.1} parent=55 // pred_check
          %p469 = pneg %p72
        $region58: #{tpu_custom_call.1} parent=55 // pred_check_branch
          %471 = sbr.rel (%p469) target = $region60
        $region59: #{tpu_custom_call.1} parent=55 // pred_region
          %472 = dma.done %s465, 128
        $region60: #{tpu_custom_call.1} parent=55 // pred_fallthru
          _
        %s473 = sand.u32 %s37, 1
        %s474 = scalar_lea.sflag [#allocation8], %s473
        %s475 = sand.u32 %s85, 1
        %s476 = smul.addr %s475, 8
        %s477 = scalar_lea.vmem [#allocation7], %s476
        // Predicated region
        $region61: #{tpu_custom_call.1} parent=55 // pred_check
          %p478 = pneg %p98
        $region62: #{tpu_custom_call.1} parent=55 // pred_check_branch
          %480 = sbr.rel (%p478) target = $region64
        $region63: #{tpu_custom_call.1} parent=55 // pred_region
          %481 = dma.done %s474, 128
        $region64: #{tpu_custom_call.1} parent=55 // pred_fallthru
          _
        %s482 = sand.u32 %s37, 1
        %s483 = scalar_lea.sflag [#allocation8], %s482
        %s484 = sand.u32 %s113, 1
        %s485 = smul.addr %s484, 2
        %s486 = scalar_lea.vmem [#allocation9], %s485
        // Predicated region
        $region65: #{tpu_custom_call.1} parent=55 // pred_check
          %p487 = pneg %p126
        $region66: #{tpu_custom_call.1} parent=55 // pred_check_branch
          %489 = sbr.rel (%p487) target = $region68
        $region67: #{tpu_custom_call.1} parent=55 // pred_region
          %490 = dma.done %s483, 32
        $region68: #{tpu_custom_call.1} parent=55 // pred_fallthru
          _
        // Predicated region
        $region69: #{tpu_custom_call.1} parent=55 // pred_check
          %p491 = pneg %p147
        $region70: #{tpu_custom_call.1} parent=55 // pred_check_branch
          %493 = sbr.rel (%p491) target = $region72
        $region71: #{tpu_custom_call.1} parent=55 // pred_region
          %494 = dma.done [#allocation11], 512
        $region72: #{tpu_custom_call.1} parent=55 // pred_fallthru
          _
        // Predicated region
        $region73: #{tpu_custom_call.1} parent=55 // pred_check
          %p495 = pneg %p168
        $region74: #{tpu_custom_call.1} parent=55 // pred_check_branch
          %497 = sbr.rel (%p495) target = $region76
        $region75: #{tpu_custom_call.1} parent=55 // pred_region
          %498 = dma.done [#allocation11], 512
        $region76: #{tpu_custom_call.1} parent=55 // pred_fallthru
          _
        // Predicated region
        $region77: #{tpu_custom_call.1} parent=55 // pred_check
          %p499 = pneg %p189
        $region78: #{tpu_custom_call.1} parent=55 // pred_check_branch
          %501 = sbr.rel (%p499) target = $region80
        $region79: #{tpu_custom_call.1} parent=55 // pred_region
          %502 = dma.done [#allocation14], 512
        $region80: #{tpu_custom_call.1} parent=55 // pred_fallthru
          _
        // Predicated region
        $region81: #{tpu_custom_call.1} parent=55 // pred_check
          %p503 = pneg %p210
        $region82: #{tpu_custom_call.1} parent=55 // pred_check_branch
          %505 = sbr.rel (%p503) target = $region84
        $region83: #{tpu_custom_call.1} parent=55 // pred_region
          %506 = dma.done [#allocation14], 512
        $region84: #{tpu_custom_call.1} parent=55 // pred_fallthru
          _
        // Predicated region
        $region85: #{tpu_custom_call.1} parent=55 // pred_check
          %p507 = pneg %p231
        $region86: #{tpu_custom_call.1} parent=55 // pred_check_branch
          %509 = sbr.rel (%p507) target = $region88
        $region87: #{tpu_custom_call.1} parent=55 // pred_region
          %510 = dma.done [#allocation17], 16
        $region88: #{tpu_custom_call.1} parent=55 // pred_fallthru
          _
        // Predicated region
        $region89: #{tpu_custom_call.1} parent=55 // pred_check
          %p511 = pneg %p252
        $region90: #{tpu_custom_call.1} parent=55 // pred_check_branch
          %513 = sbr.rel (%p511) target = $region92
        $region91: #{tpu_custom_call.1} parent=55 // pred_region
          %514 = dma.done [#allocation17], 16
        $region92: #{tpu_custom_call.1} parent=55 // pred_fallthru
          _
        %s515 = sand.u32 %s59, 1
        %s516 = scalar_lea.sflag [#allocation5], %s515
        %s517 = sand.u32 %s59, 1
        %s518 = smul.addr %s517, 8
        %s519 = scalar_lea.vmem [#allocation4], %s518
        %p520 = pneg %p72
        %p521 = pneg %p69
        %s522 = sand.u32 %s37, 1
        %s523 = scalar_lea.sflag [#allocation8], %s522
        %s524 = sand.u32 %s85, 1
        %s525 = smul.addr %s524, 8
        %s526 = scalar_lea.vmem [#allocation7], %s525
        %p527 = pneg %p98
        %p528 = pneg %p95
        %s529 = sand.u32 %s37, 1
        %s530 = scalar_lea.sflag [#allocation8], %s529
        %s531 = sand.u32 %s113, 1
        %s532 = smul.addr %s531, 2
        %s533 = scalar_lea.vmem [#allocation9], %s532
        %p534 = pneg %p126
        %p535 = pneg %p123
        %p536 = pneg %p147
        %p537 = pneg %p144
        %p538 = pneg %p168
        %p539 = pneg %p165
        %p540 = pneg %p189
        %p541 = pneg %p186
        %p542 = pneg %p210
        %p543 = pneg %p207
        %p544 = pneg %p231
        %p545 = pneg %p228
        %p546 = pneg %p252
        %p547 = pneg %p249
        %p548 = pneg %p280
        %p549 = pneg %p277
        %s550 = sand.u32 %s267, 1
        %s551 = scalar_lea.sflag [#allocation6], %s550
        %s552 = sand.u32 %s267, 1
        %s553 = smul.addr %s552, 8
        %s554 = scalar_lea.vmem [#allocation19], %s553
        %p555 = pneg %p308
        %p556 = pneg %p305
        %s557 = sand.u32 %s295, 1
        %s558 = scalar_lea.sflag [#allocation21], %s557
        %s559 = sand.u32 %s295, 1
        %s560 = smul.addr %s559, 32
        %s561 = scalar_lea.vmem [#allocation20], %s560
        %p564 = scmp.lt.s32.totalorder %s42, 1
        // Predicated region
        $region93: #{tpu_custom_call.1} parent=55 // pred_check
          %p565 = pneg %p564
        $region94: #{tpu_custom_call.1} parent=55 // pred_check_branch
          %567 = sbr.rel (%p565) target = $region96
        $region95: #{tpu_custom_call.1} parent=55 // pred_region
          %v568 = vld [vmem:[%s477] sm:$0xff]
          %v569 = vld [vmem:[#allocation12] sm:$0xff]
          %v570 = vld [vmem:[#allocation12 + $0x8] sm:$0xff]
          %v571 = vld [vmem:[#allocation12 + $0x10] sm:$0xff]
          %v572 = vld [vmem:[#allocation12 + $0x18] sm:$0xff]
          %vm573 = vcmask 261120
          %v575 = vsel %vm573, %v568, 0
          %577 = vmatprep.subr.mxu0 0.0
          %578 = vmatpush1.msra.mxu0 %v569
          %579 = vmatprep.subr.mxu0 0.0
          %580 = vmatpush1.msra.mxu0 %v570
          %581 = vmatprep.subr.mxu0 0.0
          %582 = vmatpush1.msra.mxu0 %v571
          %583 = vmatprep.subr.mxu0 0.0
          %584 = vmatpush1.msra.mxu0 %v572
          %585 = vmatprep.subr.mxu0 0.0
          %586 = vmatpush1.msra.mxu0 0.0
          %587 = vmatprep.subr.mxu0 0.0
          %588 = vmatpush1.msra.mxu0 0.0
          %589 = vmatprep.subr.mxu0 0.0
          %590 = vmatpush1.msra.mxu0 0.0
          %591 = vmatprep.subr.mxu0 0.0
          %592 = vmatpush1.msra.mxu0 0.0
          %593 = vmatprep.subr.mxu0 0.0
          %594 = vmatpush1.msra.mxu0 0.0
          %595 = vmatprep.subr.mxu0 0.0
          %596 = vmatpush1.msra.mxu0 0.0
          %597 = vmatprep.subr.mxu0 0.0
          %598 = vmatpush1.msra.mxu0 0.0
          %599 = vmatprep.subr.mxu0 0.0
          %600 = vmatpush1.msra.mxu0 0.0
          %601 = vmatprep.subr.mxu0 0.0
          %602 = vmatpush1.msra.mxu0 0.0
          %603 = vmatprep.subr.mxu0 0.0
          %604 = vmatpush1.msra.mxu0 0.0
          %605 = vmatprep.subr.mxu0 0.0
          %606 = vmatpush1.msra.mxu0 0.0
          %607 = vmatprep.subr.mxu0 0.0
          %608 = vmatpush1.msra.mxu0 0.0
          %609 = vmatprep.subr.mxu0 0.0
          %610 = vmatpush1.msra.mxu0 0.0
          %611 = vmatprep.subr.mxu0 0.0
          %612 = vmatpush1.msra.mxu0 0.0
          %613 = vmatprep.subr.mxu0 0.0
          %614 = vmatpush1.msra.mxu0 0.0
          %615 = vmatprep.subr.mxu0 0.0
          %616 = vmatpush1.msra.mxu0 0.0
          %617 = vmatprep.subr.mxu0 0.0
          %618 = vmatpush1.msra.mxu0 0.0
          %619 = vmatprep.subr.mxu0 0.0
          %620 = vmatpush1.msra.mxu0 0.0
          %621 = vmatprep.subr.mxu0 0.0
          %622 = vmatpush1.msra.mxu0 0.0
          %623 = vmatprep.subr.mxu0 0.0
          %624 = vmatpush1.msra.mxu0 0.0
          %625 = vmatprep.subr.mxu0 0.0
          %626 = vmatpush1.msra.mxu0 0.0
          %627 = vmatprep.subr.mxu0 0.0
          %628 = vmatpush1.msra.mxu0 0.0
          %629 = vmatprep.subr.mxu0 0.0
          %630 = vmatpush1.msra.mxu0 0.0
          %631 = vmatprep.subr.mxu0 0.0
          %632 = vmatpush1.msra.mxu0 0.0
          %633 = vmatprep.subr.mxu0 0.0
          %634 = vmatpush1.msra.mxu0 0.0
          %635 = vmatprep.subr.mxu0 0.0
          %636 = vmatpush1.msra.mxu0 0.0
          %637 = vmatprep.subr.mxu0 0.0
          %638 = vmatpush1.msra.mxu0 0.0
          %639 = vmatprep.subr.mxu0 0.0
          %640 = vmatpush1.msra.mxu0 0.0
          %641 = vmatprep.mubr.f32.mxu0 0.0
          %642 = vmatmul.mubr.f32.gmra.mrb[0].mxu0 %v575
          %v643 = vpop.f32.mrb[0].mxu0
          %v644 = vadd.f32 0.0, %v643
          %v645 = vpop.f32.mrb[0].mxu0
          %646 = vdwg.mxu0
          %v647 = vld [vmem:[#allocation13] sm:$0xff]
          %v648 = vld [vmem:[#allocation13 + $0x8] sm:$0xff]
          %v649 = vld [vmem:[#allocation13 + $0x10] sm:$0xff]
          %v650 = vld [vmem:[#allocation13 + $0x18] sm:$0xff]
          %651 = vmatprep.subr.mxu0 0.0
          %652 = vmatpush1.msra.mxu0 %v647
          %653 = vmatprep.subr.mxu0 0.0
          %654 = vmatpush1.msra.mxu0 %v648
          %655 = vmatprep.subr.mxu0 0.0
          %656 = vmatpush1.msra.mxu0 %v649
          %657 = vmatprep.subr.mxu0 0.0
          %658 = vmatpush1.msra.mxu0 %v650
          %659 = vmatprep.subr.mxu0 0.0
          %660 = vmatpush1.msra.mxu0 0.0
          %661 = vmatprep.subr.mxu0 0.0
          %662 = vmatpush1.msra.mxu0 0.0
          %663 = vmatprep.subr.mxu0 0.0
          %664 = vmatpush1.msra.mxu0 0.0
          %665 = vmatprep.subr.mxu0 0.0
          %666 = vmatpush1.msra.mxu0 0.0
          %667 = vmatprep.subr.mxu0 0.0
          %668 = vmatpush1.msra.mxu0 0.0
          %669 = vmatprep.subr.mxu0 0.0
          %670 = vmatpush1.msra.mxu0 0.0
          %671 = vmatprep.subr.mxu0 0.0
          %672 = vmatpush1.msra.mxu0 0.0
          %673 = vmatprep.subr.mxu0 0.0
          %674 = vmatpush1.msra.mxu0 0.0
          %675 = vmatprep.subr.mxu0 0.0
          %676 = vmatpush1.msra.mxu0 0.0
          %677 = vmatprep.subr.mxu0 0.0
          %678 = vmatpush1.msra.mxu0 0.0
          %679 = vmatprep.subr.mxu0 0.0
          %680 = vmatpush1.msra.mxu0 0.0
          %681 = vmatprep.subr.mxu0 0.0
          %682 = vmatpush1.msra.mxu0 0.0
          %683 = vmatprep.subr.mxu0 0.0
          %684 = vmatpush1.msra.mxu0 0.0
          %685 = vmatprep.subr.mxu0 0.0
          %686 = vmatpush1.msra.mxu0 0.0
          %687 = vmatprep.subr.mxu0 0.0
          %688 = vmatpush1.msra.mxu0 0.0
          %689 = vmatprep.subr.mxu0 0.0
          %690 = vmatpush1.msra.mxu0 0.0
          %691 = vmatprep.subr.mxu0 0.0
          %692 = vmatpush1.msra.mxu0 0.0
          %693 = vmatprep.subr.mxu0 0.0
          %694 = vmatpush1.msra.mxu0 0.0
          %695 = vmatprep.subr.mxu0 0.0
          %696 = vmatpush1.msra.mxu0 0.0
          %697 = vmatprep.subr.mxu0 0.0
          %698 = vmatpush1.msra.mxu0 0.0
          %699 = vmatprep.subr.mxu0 0.0
          %700 = vmatpush1.msra.mxu0 0.0
          %701 = vmatprep.subr.mxu0 0.0
          %702 = vmatpush1.msra.mxu0 0.0
          %703 = vmatprep.subr.mxu0 0.0
          %704 = vmatpush1.msra.mxu0 0.0
          %705 = vmatprep.subr.mxu0 0.0
          %706 = vmatpush1.msra.mxu0 0.0
          %707 = vmatprep.subr.mxu0 0.0
          %708 = vmatpush1.msra.mxu0 0.0
          %709 = vmatprep.subr.mxu0 0.0
          %710 = vmatpush1.msra.mxu0 0.0
          %711 = vmatprep.subr.mxu0 0.0
          %712 = vmatpush1.msra.mxu0 0.0
          %713 = vmatprep.subr.mxu0 0.0
          %714 = vmatpush1.msra.mxu0 0.0
          %715 = vmatprep.mubr.f32.mxu0 0.0
          %716 = vmatmul.mubr.f32.gmra.mrb[0].mxu0 %v575
          %v717 = vpop.f32.mrb[0].mxu0
          %v718 = vadd.f32 0.0, %v717
          %v719 = vpop.f32.mrb[0].mxu0
          %720 = vdwg.mxu0
          %722 = vrot.lane.b32.xlu0 %v644, 120
          %v723 = vpop.permute.xlu0 %722
          %725 = vrot.lane.b32.xlu0 %v644, 112
          %v726 = vpop.permute.xlu0 %725
          %728 = vrot.lane.b32.xlu0 %v644, 104
          %v729 = vpop.permute.xlu0 %728
          %v731 = vcombine.low %v644, %v726
          %v732 = vcombine.high %v644, %v726
          %v734 = vunpack.c.l.s4 1983009808
          %v735 = vunpack.c.0.s8 %v734
          %v736 = vlaneseq
          %v737 = vshrl.u32 %v736, 7
          %v738 = vsub.s32 %v735, %v737
          %v739 = vrot.slane %v731, %v738
          %v741 = vunpack.c.l.s4 1983009808
          %v742 = vunpack.c.0.s8 %v741
          %v743 = vlaneseq
          %v744 = vshrl.u32 %v743, 7
          %v745 = vsub.s32 %v742, %v744
          %v746 = vrot.slane %v732, %v745
          %v747 = vcombine.low %v723, %v729
          %v748 = vcombine.high %v723, %v729
          %v750 = vunpack.c.l.s4 1983009808
          %v751 = vunpack.c.0.s8 %v750
          %v752 = vlaneseq
          %v753 = vshrl.u32 %v752, 7
          %v754 = vsub.s32 %v751, %v753
          %v755 = vrot.slane %v747, %v754
          %v757 = vunpack.c.l.s4 1983009808
          %v758 = vunpack.c.0.s8 %v757
          %v759 = vlaneseq
          %v760 = vshrl.u32 %v759, 7
          %v761 = vsub.s32 %v758, %v760
          %v762 = vrot.slane %v748, %v761
          %v763 = vcombine.low %v739, %v755
          %v764 = vcombine.high %v739, %v755
          %v766 = vunpack.c.l.s4 1934713408
          %v767 = vunpack.c.0.s8 %v766
          %v768 = vlaneseq
          %v769 = vshrl.u32 %v768, 7
          %v770 = vsub.s32 %v767, %v769
          %v771 = vrot.slane %v763, %v770
          %v773 = vunpack.c.l.s4 1934713408
          %v774 = vunpack.c.0.s8 %v773
          %v775 = vlaneseq
          %v776 = vshrl.u32 %v775, 7
          %v777 = vsub.s32 %v774, %v776
          %v778 = vrot.slane %v764, %v777
          %v779 = vcombine.low %v746, %v762
          %v780 = vcombine.high %v746, %v762
          %v782 = vunpack.c.l.s4 1934713408
          %v783 = vunpack.c.0.s8 %v782
          %v784 = vlaneseq
          %v785 = vshrl.u32 %v784, 7
          %v786 = vsub.s32 %v783, %v785
          %v787 = vrot.slane %v779, %v786
          %v789 = vunpack.c.l.s4 1934713408
          %v790 = vunpack.c.0.s8 %v789
          %v791 = vlaneseq
          %v792 = vshrl.u32 %v791, 7
          %v793 = vsub.s32 %v790, %v792
          %v794 = vrot.slane %v780, %v793
          %v795 = vcombine.high %v771, 0.0
          %v796 = vcombine.high %v778, 0.0
          %v797 = vcombine.high %v787, 0.0
          %v798 = vcombine.high %v794, 0.0
          %v799 = vcombine.low %v771, %v778
          %v801 = vunpack.c.l.s4 1983009808
          %v802 = vunpack.c.0.s8 %v801
          %v803 = vlaneseq
          %v804 = vshrl.u32 %v803, 7
          %v805 = vsub.s32 %v802, %v804
          %v806 = vrot.slane %v799, %v805
          %v807 = vcombine.low %v795, %v796
          %v809 = vunpack.c.l.s4 1983009808
          %v810 = vunpack.c.0.s8 %v809
          %v811 = vlaneseq
          %v812 = vshrl.u32 %v811, 7
          %v813 = vsub.s32 %v810, %v812
          %v814 = vrot.slane %v807, %v813
          %v815 = vcombine.low %v787, %v794
          %v817 = vunpack.c.l.s4 1983009808
          %v818 = vunpack.c.0.s8 %v817
          %v819 = vlaneseq
          %v820 = vshrl.u32 %v819, 7
          %v821 = vsub.s32 %v818, %v820
          %v822 = vrot.slane %v815, %v821
          %v823 = vcombine.low %v797, %v798
          %v825 = vunpack.c.l.s4 1983009808
          %v826 = vunpack.c.0.s8 %v825
          %v827 = vlaneseq
          %v828 = vshrl.u32 %v827, 7
          %v829 = vsub.s32 %v826, %v828
          %v830 = vrot.slane %v823, %v829
          %v831 = vcombine.low %v806, %v814
          %v832 = vcombine.high %v806, %v814
          %v834 = vunpack.c.l.s4 1934713408
          %v835 = vunpack.c.0.s8 %v834
          %v836 = vlaneseq
          %v837 = vshrl.u32 %v836, 7
          %v838 = vsub.s32 %v835, %v837
          %v839 = vrot.slane %v831, %v838
          %v841 = vunpack.c.l.s4 1934713408
          %v842 = vunpack.c.0.s8 %v841
          %v843 = vlaneseq
          %v844 = vshrl.u32 %v843, 7
          %v845 = vsub.s32 %v842, %v844
          %v846 = vrot.slane %v832, %v845
          %v847 = vcombine.low %v822, %v830
          %v848 = vcombine.high %v822, %v830
          %v850 = vunpack.c.l.s4 1934713408
          %v851 = vunpack.c.0.s8 %v850
          %v852 = vlaneseq
          %v853 = vshrl.u32 %v852, 7
          %v854 = vsub.s32 %v851, %v853
          %v855 = vrot.slane %v847, %v854
          %v857 = vunpack.c.l.s4 1934713408
          %v858 = vunpack.c.0.s8 %v857
          %v859 = vlaneseq
          %v860 = vshrl.u32 %v859, 7
          %v861 = vsub.s32 %v858, %v860
          %v862 = vrot.slane %v848, %v861
          %v863 = vcombine.low %v839, %v855
          %v864 = vcombine.high %v839, %v855
          %v865 = vcombine.low %v846, %v862
          %v866 = vcombine.high %v846, %v862
          %vm867 = vcmask 64512
          %868 = vst.msk [vmem:[#allocation2] sm:$0xff] %vm867, %v863
          %869 = vst.msk [vmem:[#allocation2 + $0x8] sm:$0xff] %vm867, %v864
          %870 = vst.msk [vmem:[#allocation2 + $0x10] sm:$0xff] %vm867, %v865
          %871 = vst.msk [vmem:[#allocation2 + $0x18] sm:$0xff] %vm867, %v866
          %873 = vrot.lane.b32.xlu0 %v718, 120
          %v874 = vpop.permute.xlu0 %873
          %876 = vrot.lane.b32.xlu0 %v718, 112
          %v877 = vpop.permute.xlu0 %876
          %879 = vrot.lane.b32.xlu0 %v718, 104
          %v880 = vpop.permute.xlu0 %879
          %v882 = vcombine.low %v718, %v877
          %v883 = vcombine.high %v718, %v877
          %v885 = vunpack.c.l.s4 1983009808
          %v886 = vunpack.c.0.s8 %v885
          %v887 = vlaneseq
          %v888 = vshrl.u32 %v887, 7
          %v889 = vsub.s32 %v886, %v888
          %v890 = vrot.slane %v882, %v889
          %v892 = vunpack.c.l.s4 1983009808
          %v893 = vunpack.c.0.s8 %v892
          %v894 = vlaneseq
          %v895 = vshrl.u32 %v894, 7
          %v896 = vsub.s32 %v893, %v895
          %v897 = vrot.slane %v883, %v896
          %v898 = vcombine.low %v874, %v880
          %v899 = vcombine.high %v874, %v880
          %v901 = vunpack.c.l.s4 1983009808
          %v902 = vunpack.c.0.s8 %v901
          %v903 = vlaneseq
          %v904 = vshrl.u32 %v903, 7
          %v905 = vsub.s32 %v902, %v904
          %v906 = vrot.slane %v898, %v905
          %v908 = vunpack.c.l.s4 1983009808
          %v909 = vunpack.c.0.s8 %v908
          %v910 = vlaneseq
          %v911 = vshrl.u32 %v910, 7
          %v912 = vsub.s32 %v909, %v911
          %v913 = vrot.slane %v899, %v912
          %v914 = vcombine.low %v890, %v906
          %v915 = vcombine.high %v890, %v906
          %v917 = vunpack.c.l.s4 1934713408
          %v918 = vunpack.c.0.s8 %v917
          %v919 = vlaneseq
          %v920 = vshrl.u32 %v919, 7
          %v921 = vsub.s32 %v918, %v920
          %v922 = vrot.slane %v914, %v921
          %v924 = vunpack.c.l.s4 1934713408
          %v925 = vunpack.c.0.s8 %v924
          %v926 = vlaneseq
          %v927 = vshrl.u32 %v926, 7
          %v928 = vsub.s32 %v925, %v927
          %v929 = vrot.slane %v915, %v928
          %v930 = vcombine.low %v897, %v913
          %v931 = vcombine.high %v897, %v913
          %v933 = vunpack.c.l.s4 1934713408
          %v934 = vunpack.c.0.s8 %v933
          %v935 = vlaneseq
          %v936 = vshrl.u32 %v935, 7
          %v937 = vsub.s32 %v934, %v936
          %v938 = vrot.slane %v930, %v937
          %v940 = vunpack.c.l.s4 1934713408
          %v941 = vunpack.c.0.s8 %v940
          %v942 = vlaneseq
          %v943 = vshrl.u32 %v942, 7
          %v944 = vsub.s32 %v941, %v943
          %v945 = vrot.slane %v931, %v944
          %v946 = vcombine.high %v922, 0.0
          %v947 = vcombine.high %v929, 0.0
          %v948 = vcombine.high %v938, 0.0
          %v949 = vcombine.high %v945, 0.0
          %v950 = vcombine.low %v922, %v929
          %v952 = vunpack.c.l.s4 1983009808
          %v953 = vunpack.c.0.s8 %v952
          %v954 = vlaneseq
          %v955 = vshrl.u32 %v954, 7
          %v956 = vsub.s32 %v953, %v955
          %v957 = vrot.slane %v950, %v956
          %v958 = vcombine.low %v946, %v947
          %v960 = vunpack.c.l.s4 1983009808
          %v961 = vunpack.c.0.s8 %v960
          %v962 = vlaneseq
          %v963 = vshrl.u32 %v962, 7
          %v964 = vsub.s32 %v961, %v963
          %v965 = vrot.slane %v958, %v964
          %v966 = vcombine.low %v938, %v945
          %v968 = vunpack.c.l.s4 1983009808
          %v969 = vunpack.c.0.s8 %v968
          %v970 = vlaneseq
          %v971 = vshrl.u32 %v970, 7
          %v972 = vsub.s32 %v969, %v971
          %v973 = vrot.slane %v966, %v972
          %v974 = vcombine.low %v948, %v949
          %v976 = vunpack.c.l.s4 1983009808
          %v977 = vunpack.c.0.s8 %v976
          %v978 = vlaneseq
          %v979 = vshrl.u32 %v978, 7
          %v980 = vsub.s32 %v977, %v979
          %v981 = vrot.slane %v974, %v980
          %v982 = vcombine.low %v957, %v965
          %v983 = vcombine.high %v957, %v965
          %v985 = vunpack.c.l.s4 1934713408
          %v986 = vunpack.c.0.s8 %v985
          %v987 = vlaneseq
          %v988 = vshrl.u32 %v987, 7
          %v989 = vsub.s32 %v986, %v988
          %v990 = vrot.slane %v982, %v989
          %v992 = vunpack.c.l.s4 1934713408
          %v993 = vunpack.c.0.s8 %v992
          %v994 = vlaneseq
          %v995 = vshrl.u32 %v994, 7
          %v996 = vsub.s32 %v993, %v995
          %v997 = vrot.slane %v983, %v996
          %v998 = vcombine.low %v973, %v981
          %v999 = vcombine.high %v973, %v981
          %v1001 = vunpack.c.l.s4 1934713408
          %v1002 = vunpack.c.0.s8 %v1001
          %v1003 = vlaneseq
          %v1004 = vshrl.u32 %v1003, 7
          %v1005 = vsub.s32 %v1002, %v1004
          %v1006 = vrot.slane %v998, %v1005
          %v1008 = vunpack.c.l.s4 1934713408
          %v1009 = vunpack.c.0.s8 %v1008
          %v1010 = vlaneseq
          %v1011 = vshrl.u32 %v1010, 7
          %v1012 = vsub.s32 %v1009, %v1011
          %v1013 = vrot.slane %v999, %v1012
          %v1014 = vcombine.low %v990, %v1006
          %v1015 = vcombine.high %v990, %v1006
          %v1016 = vcombine.low %v997, %v1013
          %v1017 = vcombine.high %v997, %v1013
          %1018 = vst.msk [vmem:[#allocation3] sm:$0xff] %vm867, %v1014
          %1019 = vst.msk [vmem:[#allocation3 + $0x8] sm:$0xff] %vm867, %v1015
          %1020 = vst.msk [vmem:[#allocation3 + $0x10] sm:$0xff] %vm867, %v1016
          %1021 = vst.msk [vmem:[#allocation3 + $0x18] sm:$0xff] %vm867, %v1017
        $region96: #{tpu_custom_call.1} parent=55 // pred_fallthru
          _
        %v1022 = vld [vmem:[%s468] sm:$0xff]
        %v1023 = vld [vmem:[%s486] sm:$0x3]
        %v1024 = vld [vmem:[#allocation10] sm:$0xff]
        %v1025 = vld [vmem:[#allocation10 + $0x8] sm:$0xff]
        %v1026 = vld [vmem:[#allocation10 + $0x10] sm:$0xff]
        %v1027 = vld [vmem:[#allocation10 + $0x18] sm:$0xff]
        %vm1028 = vcmask 261120
        %v1030 = vsel %vm1028, %v1022, 0
        %1032 = vmatprep.subr.mxu0 0.0
        %1033 = vmatpush1.msra.mxu0 %v1024
        %1034 = vmatprep.subr.mxu0 0.0
        %1035 = vmatpush1.msra.mxu0 %v1025
        %1036 = vmatprep.subr.mxu0 0.0
        %1037 = vmatpush1.msra.mxu0 %v1026
        %1038 = vmatprep.subr.mxu0 0.0
        %1039 = vmatpush1.msra.mxu0 %v1027
        %1040 = vmatprep.subr.mxu0 0.0
        %1041 = vmatpush1.msra.mxu0 0.0
        %1042 = vmatprep.subr.mxu0 0.0
        %1043 = vmatpush1.msra.mxu0 0.0
        %1044 = vmatprep.subr.mxu0 0.0
        %1045 = vmatpush1.msra.mxu0 0.0
        %1046 = vmatprep.subr.mxu0 0.0
        %1047 = vmatpush1.msra.mxu0 0.0
        %1048 = vmatprep.subr.mxu0 0.0
        %1049 = vmatpush1.msra.mxu0 0.0
        %1050 = vmatprep.subr.mxu0 0.0
        %1051 = vmatpush1.msra.mxu0 0.0
        %1052 = vmatprep.subr.mxu0 0.0
        %1053 = vmatpush1.msra.mxu0 0.0
        %1054 = vmatprep.subr.mxu0 0.0
        %1055 = vmatpush1.msra.mxu0 0.0
        %1056 = vmatprep.subr.mxu0 0.0
        %1057 = vmatpush1.msra.mxu0 0.0
        %1058 = vmatprep.subr.mxu0 0.0
        %1059 = vmatpush1.msra.mxu0 0.0
        %1060 = vmatprep.subr.mxu0 0.0
        %1061 = vmatpush1.msra.mxu0 0.0
        %1062 = vmatprep.subr.mxu0 0.0
        %1063 = vmatpush1.msra.mxu0 0.0
        %1064 = vmatprep.subr.mxu0 0.0
        %1065 = vmatpush1.msra.mxu0 0.0
        %1066 = vmatprep.subr.mxu0 0.0
        %1067 = vmatpush1.msra.mxu0 0.0
        %1068 = vmatprep.subr.mxu0 0.0
        %1069 = vmatpush1.msra.mxu0 0.0
        %1070 = vmatprep.subr.mxu0 0.0
        %1071 = vmatpush1.msra.mxu0 0.0
        %1072 = vmatprep.subr.mxu0 0.0
        %1073 = vmatpush1.msra.mxu0 0.0
        %1074 = vmatprep.subr.mxu0 0.0
        %1075 = vmatpush1.msra.mxu0 0.0
        %1076 = vmatprep.subr.mxu0 0.0
        %1077 = vmatpush1.msra.mxu0 0.0
        %1078 = vmatprep.subr.mxu0 0.0
        %1079 = vmatpush1.msra.mxu0 0.0
        %1080 = vmatprep.subr.mxu0 0.0
        %1081 = vmatpush1.msra.mxu0 0.0
        %1082 = vmatprep.subr.mxu0 0.0
        %1083 = vmatpush1.msra.mxu0 0.0
        %1084 = vmatprep.subr.mxu0 0.0
        %1085 = vmatpush1.msra.mxu0 0.0
        %1086 = vmatprep.subr.mxu0 0.0
        %1087 = vmatpush1.msra.mxu0 0.0
        %1088 = vmatprep.subr.mxu0 0.0
        %1089 = vmatpush1.msra.mxu0 0.0
        %1090 = vmatprep.subr.mxu0 0.0
        %1091 = vmatpush1.msra.mxu0 0.0
        %1092 = vmatprep.subr.mxu0 0.0
        %1093 = vmatpush1.msra.mxu0 0.0
        %1094 = vmatprep.subr.mxu0 0.0
        %1095 = vmatpush1.msra.mxu0 0.0
        %1096 = vmatprep.mubr.f32.mxu0 0.0
        %1097 = vmatmul.mubr.f32.gmra.mrb[0].mxu0 %v1030
        %v1098 = vpop.f32.mrb[0].mxu0
        %v1099 = vadd.f32 0.0, %v1098
        %v1100 = vpop.f32.mrb[0].mxu0
        %1101 = vdwg.mxu0
        %v1102 = vmul.f32 %v1099, 0.17677669
        %1104 = vrot.lane.b32.xlu0 %v1102, 120
        %v1105 = vpop.permute.xlu0 %1104
        %1107 = vrot.lane.b32.xlu0 %v1102, 112
        %v1108 = vpop.permute.xlu0 %1107
        %1110 = vrot.lane.b32.xlu0 %v1102, 104
        %v1111 = vpop.permute.xlu0 %1110
        %v1113 = vcombine.low %v1102, %v1108
        %v1114 = vcombine.high %v1102, %v1108
        %v1116 = vunpack.c.l.s4 1983009808
        %v1117 = vunpack.c.0.s8 %v1116
        %v1118 = vlaneseq
        %v1119 = vshrl.u32 %v1118, 7
        %v1120 = vsub.s32 %v1117, %v1119
        %v1121 = vrot.slane %v1113, %v1120
        %v1123 = vunpack.c.l.s4 1983009808
        %v1124 = vunpack.c.0.s8 %v1123
        %v1125 = vlaneseq
        %v1126 = vshrl.u32 %v1125, 7
        %v1127 = vsub.s32 %v1124, %v1126
        %v1128 = vrot.slane %v1114, %v1127
        %v1129 = vcombine.low %v1105, %v1111
        %v1130 = vcombine.high %v1105, %v1111
        %v1132 = vunpack.c.l.s4 1983009808
        %v1133 = vunpack.c.0.s8 %v1132
        %v1134 = vlaneseq
        %v1135 = vshrl.u32 %v1134, 7
        %v1136 = vsub.s32 %v1133, %v1135
        %v1137 = vrot.slane %v1129, %v1136
        %v1139 = vunpack.c.l.s4 1983009808
        %v1140 = vunpack.c.0.s8 %v1139
        %v1141 = vlaneseq
        %v1142 = vshrl.u32 %v1141, 7
        %v1143 = vsub.s32 %v1140, %v1142
        %v1144 = vrot.slane %v1130, %v1143
        %v1145 = vcombine.low %v1121, %v1137
        %v1146 = vcombine.high %v1121, %v1137
        %v1148 = vunpack.c.l.s4 1934713408
        %v1149 = vunpack.c.0.s8 %v1148
        %v1150 = vlaneseq
        %v1151 = vshrl.u32 %v1150, 7
        %v1152 = vsub.s32 %v1149, %v1151
        %v1153 = vrot.slane %v1145, %v1152
        %v1155 = vunpack.c.l.s4 1934713408
        %v1156 = vunpack.c.0.s8 %v1155
        %v1157 = vlaneseq
        %v1158 = vshrl.u32 %v1157, 7
        %v1159 = vsub.s32 %v1156, %v1158
        %v1160 = vrot.slane %v1146, %v1159
        %v1161 = vcombine.low %v1128, %v1144
        %v1162 = vcombine.high %v1128, %v1144
        %v1164 = vunpack.c.l.s4 1934713408
        %v1165 = vunpack.c.0.s8 %v1164
        %v1166 = vlaneseq
        %v1167 = vshrl.u32 %v1166, 7
        %v1168 = vsub.s32 %v1165, %v1167
        %v1169 = vrot.slane %v1161, %v1168
        %v1171 = vunpack.c.l.s4 1934713408
        %v1172 = vunpack.c.0.s8 %v1171
        %v1173 = vlaneseq
        %v1174 = vshrl.u32 %v1173, 7
        %v1175 = vsub.s32 %v1172, %v1174
        %v1176 = vrot.slane %v1162, %v1175
        %v1177 = vcombine.high %v1153, 0.0
        %v1178 = vcombine.high %v1160, 0.0
        %v1179 = vcombine.high %v1169, 0.0
        %v1180 = vcombine.high %v1176, 0.0
        %v1181 = vcombine.low %v1153, %v1160
        %v1183 = vunpack.c.l.s4 1983009808
        %v1184 = vunpack.c.0.s8 %v1183
        %v1185 = vlaneseq
        %v1186 = vshrl.u32 %v1185, 7
        %v1187 = vsub.s32 %v1184, %v1186
        %v1188 = vrot.slane %v1181, %v1187
        %v1189 = vcombine.low %v1177, %v1178
        %v1191 = vunpack.c.l.s4 1983009808
        %v1192 = vunpack.c.0.s8 %v1191
        %v1193 = vlaneseq
        %v1194 = vshrl.u32 %v1193, 7
        %v1195 = vsub.s32 %v1192, %v1194
        %v1196 = vrot.slane %v1189, %v1195
        %v1197 = vcombine.low %v1169, %v1176
        %v1199 = vunpack.c.l.s4 1983009808
        %v1200 = vunpack.c.0.s8 %v1199
        %v1201 = vlaneseq
        %v1202 = vshrl.u32 %v1201, 7
        %v1203 = vsub.s32 %v1200, %v1202
        %v1204 = vrot.slane %v1197, %v1203
        %v1205 = vcombine.low %v1179, %v1180
        %v1207 = vunpack.c.l.s4 1983009808
        %v1208 = vunpack.c.0.s8 %v1207
        %v1209 = vlaneseq
        %v1210 = vshrl.u32 %v1209, 7
        %v1211 = vsub.s32 %v1208, %v1210
        %v1212 = vrot.slane %v1205, %v1211
        %v1213 = vcombine.low %v1188, %v1196
        %v1214 = vcombine.high %v1188, %v1196
        %v1216 = vunpack.c.l.s4 1934713408
        %v1217 = vunpack.c.0.s8 %v1216
        %v1218 = vlaneseq
        %v1219 = vshrl.u32 %v1218, 7
        %v1220 = vsub.s32 %v1217, %v1219
        %v1221 = vrot.slane %v1213, %v1220
        %v1223 = vunpack.c.l.s4 1934713408
        %v1224 = vunpack.c.0.s8 %v1223
        %v1225 = vlaneseq
        %v1226 = vshrl.u32 %v1225, 7
        %v1227 = vsub.s32 %v1224, %v1226
        %v1228 = vrot.slane %v1214, %v1227
        %v1229 = vcombine.low %v1204, %v1212
        %v1230 = vcombine.high %v1204, %v1212
        %v1232 = vunpack.c.l.s4 1934713408
        %v1233 = vunpack.c.0.s8 %v1232
        %v1234 = vlaneseq
        %v1235 = vshrl.u32 %v1234, 7
        %v1236 = vsub.s32 %v1233, %v1235
        %v1237 = vrot.slane %v1229, %v1236
        %v1239 = vunpack.c.l.s4 1934713408
        %v1240 = vunpack.c.0.s8 %v1239
        %v1241 = vlaneseq
        %v1242 = vshrl.u32 %v1241, 7
        %v1243 = vsub.s32 %v1240, %v1242
        %v1244 = vrot.slane %v1230, %v1243
        %v1245 = vcombine.low %v1221, %v1237
        %v1246 = vcombine.high %v1221, %v1237
        %v1247 = vcombine.low %v1228, %v1244
        %v1248 = vcombine.high %v1228, %v1244
        %v1249 = vld [vmem:[#allocation2] sm:$0xff]
        %v1250 = vld [vmem:[#allocation2 + $0x8] sm:$0xff]
        %v1251 = vld [vmem:[#allocation2 + $0x10] sm:$0xff]
        %v1252 = vld [vmem:[#allocation2 + $0x18] sm:$0xff]
        %v1253 = vld [vmem:[#allocation3] sm:$0xff]
        %v1254 = vld [vmem:[#allocation3 + $0x8] sm:$0xff]
        %v1255 = vld [vmem:[#allocation3 + $0x10] sm:$0xff]
        %v1256 = vld [vmem:[#allocation3 + $0x18] sm:$0xff]
        %vm1257 = vcmask 64512
        %v1259 = vsel %vm1257, %v1245, 0
        %v1262 = vsel %vm1257, %v1249, 0
        %1264 = vmatprep.subr.mxu0 0.0
        %1265 = vmatpush1.xpose.msra.mxu0 %v1262
        %1266 = vmatprep.subr.mxu0 0.0
        %1267 = vmatpush1.xpose.msra.mxu0 0.0
        %1268 = vmatprep.subr.mxu0 0.0
        %1269 = vmatpush1.xpose.msra.mxu0 0.0
        %1270 = vmatprep.subr.mxu0 0.0
        %1271 = vmatpush1.xpose.msra.mxu0 0.0
        %1272 = vmatprep.subr.mxu0 0.0
        %1273 = vmatpush1.xpose.msra.mxu0 0.0
        %1274 = vmatprep.subr.mxu0 0.0
        %1275 = vmatpush1.xpose.msra.mxu0 0.0
        %1276 = vmatprep.subr.mxu0 0.0
        %1277 = vmatpush1.xpose.msra.mxu0 0.0
        %1278 = vmatprep.subr.mxu0 0.0
        %1279 = vmatpush1.xpose.msra.mxu0 0.0
        %1280 = vmatprep.subr.mxu0 0.0
        %1281 = vmatpush1.xpose.msra.mxu0 0.0
        %1282 = vmatprep.subr.mxu0 0.0
        %1283 = vmatpush1.xpose.msra.mxu0 0.0
        %1284 = vmatprep.subr.mxu0 0.0
        %1285 = vmatpush1.xpose.msra.mxu0 0.0
        %1286 = vmatprep.subr.mxu0 0.0
        %1287 = vmatpush1.xpose.msra.mxu0 0.0
        %1288 = vmatprep.subr.mxu0 0.0
        %1289 = vmatpush1.xpose.msra.mxu0 0.0
        %1290 = vmatprep.subr.mxu0 0.0
        %1291 = vmatpush1.xpose.msra.mxu0 0.0
        %1292 = vmatprep.subr.mxu0 0.0
        %1293 = vmatpush1.xpose.msra.mxu0 0.0
        %1294 = vmatprep.subr.mxu0 0.0
        %1295 = vmatpush1.xpose.msra.mxu0 0.0
        %1296 = vmatprep.subr.mxu0 0.0
        %1297 = vmatpush1.xpose.msra.mxu0 0.0
        %1298 = vmatprep.subr.mxu0 0.0
        %1299 = vmatpush1.xpose.msra.mxu0 0.0
        %1300 = vmatprep.subr.mxu0 0.0
        %1301 = vmatpush1.xpose.msra.mxu0 0.0
        %1302 = vmatprep.subr.mxu0 0.0
        %1303 = vmatpush1.xpose.msra.mxu0 0.0
        %1304 = vmatprep.subr.mxu0 0.0
        %1305 = vmatpush1.xpose.msra.mxu0 0.0
        %1306 = vmatprep.subr.mxu0 0.0
        %1307 = vmatpush1.xpose.msra.mxu0 0.0
        %1308 = vmatprep.subr.mxu0 0.0
        %1309 = vmatpush1.xpose.msra.mxu0 0.0
        %1310 = vmatprep.subr.mxu0 0.0
        %1311 = vmatpush1.xpose.msra.mxu0 0.0
        %1312 = vmatprep.subr.mxu0 0.0
        %1313 = vmatpush1.xpose.msra.mxu0 0.0
        %1314 = vmatprep.subr.mxu0 0.0
        %1315 = vmatpush1.xpose.msra.mxu0 0.0
        %1316 = vmatprep.subr.mxu0 0.0
        %1317 = vmatpush1.xpose.msra.mxu0 0.0
        %1318 = vmatprep.subr.mxu0 0.0
        %1319 = vmatpush1.xpose.msra.mxu0 0.0
        %1320 = vmatprep.subr.mxu0 0.0
        %1321 = vmatpush1.xpose.msra.mxu0 0.0
        %1322 = vmatprep.subr.mxu0 0.0
        %1323 = vmatpush1.xpose.msra.mxu0 0.0
        %1324 = vmatprep.subr.mxu0 0.0
        %1325 = vmatpush1.xpose.msra.mxu0 0.0
        %1326 = vmatprep.subr.mxu0 0.0
        %1327 = vmatpush1.xpose.msra.mxu0 0.0
        %1328 = vmatprep.mubr.f32.mxu0 0.0
        %1329 = vmatmul.mubr.f32.gmra.mrb[0].mxu0 %v1259
        %v1330 = vpop.f32.mrb[0].mxu0
        %v1331 = vadd.f32 0.0, %v1330
        %v1332 = vpop.f32.mrb[0].mxu0
        %1333 = vdwg.mxu0
        %v1335 = vsel %vm1257, %v1246, 0
        %v1338 = vsel %vm1257, %v1250, 0
        %1340 = vmatprep.subr.mxu0 0.0
        %1341 = vmatpush1.xpose.msra.mxu0 %v1338
        %1342 = vmatprep.subr.mxu0 0.0
        %1343 = vmatpush1.xpose.msra.mxu0 0.0
        %1344 = vmatprep.subr.mxu0 0.0
        %1345 = vmatpush1.xpose.msra.mxu0 0.0
        %1346 = vmatprep.subr.mxu0 0.0
        %1347 = vmatpush1.xpose.msra.mxu0 0.0
        %1348 = vmatprep.subr.mxu0 0.0
        %1349 = vmatpush1.xpose.msra.mxu0 0.0
        %1350 = vmatprep.subr.mxu0 0.0
        %1351 = vmatpush1.xpose.msra.mxu0 0.0
        %1352 = vmatprep.subr.mxu0 0.0
        %1353 = vmatpush1.xpose.msra.mxu0 0.0
        %1354 = vmatprep.subr.mxu0 0.0
        %1355 = vmatpush1.xpose.msra.mxu0 0.0
        %1356 = vmatprep.subr.mxu0 0.0
        %1357 = vmatpush1.xpose.msra.mxu0 0.0
        %1358 = vmatprep.subr.mxu0 0.0
        %1359 = vmatpush1.xpose.msra.mxu0 0.0
        %1360 = vmatprep.subr.mxu0 0.0
        %1361 = vmatpush1.xpose.msra.mxu0 0.0
        %1362 = vmatprep.subr.mxu0 0.0
        %1363 = vmatpush1.xpose.msra.mxu0 0.0
        %1364 = vmatprep.subr.mxu0 0.0
        %1365 = vmatpush1.xpose.msra.mxu0 0.0
        %1366 = vmatprep.subr.mxu0 0.0
        %1367 = vmatpush1.xpose.msra.mxu0 0.0
        %1368 = vmatprep.subr.mxu0 0.0
        %1369 = vmatpush1.xpose.msra.mxu0 0.0
        %1370 = vmatprep.subr.mxu0 0.0
        %1371 = vmatpush1.xpose.msra.mxu0 0.0
        %1372 = vmatprep.subr.mxu0 0.0
        %1373 = vmatpush1.xpose.msra.mxu0 0.0
        %1374 = vmatprep.subr.mxu0 0.0
        %1375 = vmatpush1.xpose.msra.mxu0 0.0
        %1376 = vmatprep.subr.mxu0 0.0
        %1377 = vmatpush1.xpose.msra.mxu0 0.0
        %1378 = vmatprep.subr.mxu0 0.0
        %1379 = vmatpush1.xpose.msra.mxu0 0.0
        %1380 = vmatprep.subr.mxu0 0.0
        %1381 = vmatpush1.xpose.msra.mxu0 0.0
        %1382 = vmatprep.subr.mxu0 0.0
        %1383 = vmatpush1.xpose.msra.mxu0 0.0
        %1384 = vmatprep.subr.mxu0 0.0
        %1385 = vmatpush1.xpose.msra.mxu0 0.0
        %1386 = vmatprep.subr.mxu0 0.0
        %1387 = vmatpush1.xpose.msra.mxu0 0.0
        %1388 = vmatprep.subr.mxu0 0.0
        %1389 = vmatpush1.xpose.msra.mxu0 0.0
        %1390 = vmatprep.subr.mxu0 0.0
        %1391 = vmatpush1.xpose.msra.mxu0 0.0
        %1392 = vmatprep.subr.mxu0 0.0
        %1393 = vmatpush1.xpose.msra.mxu0 0.0
        %1394 = vmatprep.subr.mxu0 0.0
        %1395 = vmatpush1.xpose.msra.mxu0 0.0
        %1396 = vmatprep.subr.mxu0 0.0
        %1397 = vmatpush1.xpose.msra.mxu0 0.0
        %1398 = vmatprep.subr.mxu0 0.0
        %1399 = vmatpush1.xpose.msra.mxu0 0.0
        %1400 = vmatprep.subr.mxu0 0.0
        %1401 = vmatpush1.xpose.msra.mxu0 0.0
        %1402 = vmatprep.subr.mxu0 0.0
        %1403 = vmatpush1.xpose.msra.mxu0 0.0
        %1404 = vmatprep.mubr.f32.mxu0 0.0
        %1405 = vmatmul.mubr.f32.gmra.mrb[0].mxu0 %v1335
        %v1406 = vpop.f32.mrb[0].mxu0
        %v1407 = vadd.f32 0.0, %v1406
        %v1408 = vpop.f32.mrb[0].mxu0
        %1409 = vdwg.mxu0
        %v1411 = vsel %vm1257, %v1247, 0
        %v1414 = vsel %vm1257, %v1251, 0
        %1416 = vmatprep.subr.mxu0 0.0
        %1417 = vmatpush1.xpose.msra.mxu0 %v1414
        %1418 = vmatprep.subr.mxu0 0.0
        %1419 = vmatpush1.xpose.msra.mxu0 0.0
        %1420 = vmatprep.subr.mxu0 0.0
        %1421 = vmatpush1.xpose.msra.mxu0 0.0
        %1422 = vmatprep.subr.mxu0 0.0
        %1423 = vmatpush1.xpose.msra.mxu0 0.0
        %1424 = vmatprep.subr.mxu0 0.0
        %1425 = vmatpush1.xpose.msra.mxu0 0.0
        %1426 = vmatprep.subr.mxu0 0.0
        %1427 = vmatpush1.xpose.msra.mxu0 0.0
        %1428 = vmatprep.subr.mxu0 0.0
        %1429 = vmatpush1.xpose.msra.mxu0 0.0
        %1430 = vmatprep.subr.mxu0 0.0
        %1431 = vmatpush1.xpose.msra.mxu0 0.0
        %1432 = vmatprep.subr.mxu0 0.0
        %1433 = vmatpush1.xpose.msra.mxu0 0.0
        %1434 = vmatprep.subr.mxu0 0.0
        %1435 = vmatpush1.xpose.msra.mxu0 0.0
        %1436 = vmatprep.subr.mxu0 0.0
        %1437 = vmatpush1.xpose.msra.mxu0 0.0
        %1438 = vmatprep.subr.mxu0 0.0
        %1439 = vmatpush1.xpose.msra.mxu0 0.0
        %1440 = vmatprep.subr.mxu0 0.0
        %1441 = vmatpush1.xpose.msra.mxu0 0.0
        %1442 = vmatprep.subr.mxu0 0.0
        %1443 = vmatpush1.xpose.msra.mxu0 0.0
        %1444 = vmatprep.subr.mxu0 0.0
        %1445 = vmatpush1.xpose.msra.mxu0 0.0
        %1446 = vmatprep.subr.mxu0 0.0
        %1447 = vmatpush1.xpose.msra.mxu0 0.0
        %1448 = vmatprep.subr.mxu0 0.0
        %1449 = vmatpush1.xpose.msra.mxu0 0.0
        %1450 = vmatprep.subr.mxu0 0.0
        %1451 = vmatpush1.xpose.msra.mxu0 0.0
        %1452 = vmatprep.subr.mxu0 0.0
        %1453 = vmatpush1.xpose.msra.mxu0 0.0
        %1454 = vmatprep.subr.mxu0 0.0
        %1455 = vmatpush1.xpose.msra.mxu0 0.0
        %1456 = vmatprep.subr.mxu0 0.0
        %1457 = vmatpush1.xpose.msra.mxu0 0.0
        %1458 = vmatprep.subr.mxu0 0.0
        %1459 = vmatpush1.xpose.msra.mxu0 0.0
        %1460 = vmatprep.subr.mxu0 0.0
        %1461 = vmatpush1.xpose.msra.mxu0 0.0
        %1462 = vmatprep.subr.mxu0 0.0
        %1463 = vmatpush1.xpose.msra.mxu0 0.0
        %1464 = vmatprep.subr.mxu0 0.0
        %1465 = vmatpush1.xpose.msra.mxu0 0.0
        %1466 = vmatprep.subr.mxu0 0.0
        %1467 = vmatpush1.xpose.msra.mxu0 0.0
        %1468 = vmatprep.subr.mxu0 0.0
        %1469 = vmatpush1.xpose.msra.mxu0 0.0
        %1470 = vmatprep.subr.mxu0 0.0
        %1471 = vmatpush1.xpose.msra.mxu0 0.0
        %1472 = vmatprep.subr.mxu0 0.0
        %1473 = vmatpush1.xpose.msra.mxu0 0.0
        %1474 = vmatprep.subr.mxu0 0.0
        %1475 = vmatpush1.xpose.msra.mxu0 0.0
        %1476 = vmatprep.subr.mxu0 0.0
        %1477 = vmatpush1.xpose.msra.mxu0 0.0
        %1478 = vmatprep.subr.mxu0 0.0
        %1479 = vmatpush1.xpose.msra.mxu0 0.0
        %1480 = vmatprep.mubr.f32.mxu0 0.0
        %1481 = vmatmul.mubr.f32.gmra.mrb[0].mxu0 %v1411
        %v1482 = vpop.f32.mrb[0].mxu0
        %v1483 = vadd.f32 0.0, %v1482
        %v1484 = vpop.f32.mrb[0].mxu0
        %1485 = vdwg.mxu0
        %v1487 = vsel %vm1257, %v1248, 0
        %v1490 = vsel %vm1257, %v1252, 0
        %1492 = vmatprep.subr.mxu0 0.0
        %1493 = vmatpush1.xpose.msra.mxu0 %v1490
        %1494 = vmatprep.subr.mxu0 0.0
        %1495 = vmatpush1.xpose.msra.mxu0 0.0
        %1496 = vmatprep.subr.mxu0 0.0
        %1497 = vmatpush1.xpose.msra.mxu0 0.0
        %1498 = vmatprep.subr.mxu0 0.0
        %1499 = vmatpush1.xpose.msra.mxu0 0.0
        %1500 = vmatprep.subr.mxu0 0.0
        %1501 = vmatpush1.xpose.msra.mxu0 0.0
        %1502 = vmatprep.subr.mxu0 0.0
        %1503 = vmatpush1.xpose.msra.mxu0 0.0
        %1504 = vmatprep.subr.mxu0 0.0
        %1505 = vmatpush1.xpose.msra.mxu0 0.0
        %1506 = vmatprep.subr.mxu0 0.0
        %1507 = vmatpush1.xpose.msra.mxu0 0.0
        %1508 = vmatprep.subr.mxu0 0.0
        %1509 = vmatpush1.xpose.msra.mxu0 0.0
        %1510 = vmatprep.subr.mxu0 0.0
        %1511 = vmatpush1.xpose.msra.mxu0 0.0
        %1512 = vmatprep.subr.mxu0 0.0
        %1513 = vmatpush1.xpose.msra.mxu0 0.0
        %1514 = vmatprep.subr.mxu0 0.0
        %1515 = vmatpush1.xpose.msra.mxu0 0.0
        %1516 = vmatprep.subr.mxu0 0.0
        %1517 = vmatpush1.xpose.msra.mxu0 0.0
        %1518 = vmatprep.subr.mxu0 0.0
        %1519 = vmatpush1.xpose.msra.mxu0 0.0
        %1520 = vmatprep.subr.mxu0 0.0
        %1521 = vmatpush1.xpose.msra.mxu0 0.0
        %1522 = vmatprep.subr.mxu0 0.0
        %1523 = vmatpush1.xpose.msra.mxu0 0.0
        %1524 = vmatprep.subr.mxu0 0.0
        %1525 = vmatpush1.xpose.msra.mxu0 0.0
        %1526 = vmatprep.subr.mxu0 0.0
        %1527 = vmatpush1.xpose.msra.mxu0 0.0
        %1528 = vmatprep.subr.mxu0 0.0
        %1529 = vmatpush1.xpose.msra.mxu0 0.0
        %1530 = vmatprep.subr.mxu0 0.0
        %1531 = vmatpush1.xpose.msra.mxu0 0.0
        %1532 = vmatprep.subr.mxu0 0.0
        %1533 = vmatpush1.xpose.msra.mxu0 0.0
        %1534 = vmatprep.subr.mxu0 0.0
        %1535 = vmatpush1.xpose.msra.mxu0 0.0
        %1536 = vmatprep.subr.mxu0 0.0
        %1537 = vmatpush1.xpose.msra.mxu0 0.0
        %1538 = vmatprep.subr.mxu0 0.0
        %1539 = vmatpush1.xpose.msra.mxu0 0.0
        %1540 = vmatprep.subr.mxu0 0.0
        %1541 = vmatpush1.xpose.msra.mxu0 0.0
        %1542 = vmatprep.subr.mxu0 0.0
        %1543 = vmatpush1.xpose.msra.mxu0 0.0
        %1544 = vmatprep.subr.mxu0 0.0
        %1545 = vmatpush1.xpose.msra.mxu0 0.0
        %1546 = vmatprep.subr.mxu0 0.0
        %1547 = vmatpush1.xpose.msra.mxu0 0.0
        %1548 = vmatprep.subr.mxu0 0.0
        %1549 = vmatpush1.xpose.msra.mxu0 0.0
        %1550 = vmatprep.subr.mxu0 0.0
        %1551 = vmatpush1.xpose.msra.mxu0 0.0
        %1552 = vmatprep.subr.mxu0 0.0
        %1553 = vmatpush1.xpose.msra.mxu0 0.0
        %1554 = vmatprep.subr.mxu0 0.0
        %1555 = vmatpush1.xpose.msra.mxu0 0.0
        %1556 = vmatprep.mubr.f32.mxu0 0.0
        %1557 = vmatmul.mubr.f32.gmra.mrb[0].mxu0 %v1487
        %v1558 = vpop.f32.mrb[0].mxu0
        %v1559 = vadd.f32 0.0, %v1558
        %v1560 = vpop.f32.mrb[0].mxu0
        %1561 = vdwg.mxu0
        %vm1562 = vnez %v1023
        %v1563 = vsel %vm1562, 16843009, 0
        %v1564 = vunpack.c.0.s8 %v1563
        %vm1565 = vcmp.ne.s32.totalorder %v1564, 0
        %v1566 = vsel %vm1565, 1, 0
        %vm1567 = vcmp.eq.s32.totalorder %v1566, 1
        %v1568 = vsel %vm1567, -1e+09, %v1331
        %v1569 = vsel %vm1567, -1e+09, %v1407
        %v1570 = vsel %vm1567, -1e+09, %v1483
        %v1571 = vsel %vm1567, -1e+09, %v1559
        %v1572 = vsel %vm1257, %v1568, -inf
        %1573 = vmax.xlane.f32.xlu0 %v1572
        %v1574 = vpop.xlane.xlu0 %1573
        %v1575 = vsel %vm1257, %v1569, -inf
        %1576 = vmax.xlane.f32.xlu0 %v1575
        %v1577 = vpop.xlane.xlu0 %1576
        %v1578 = vsel %vm1257, %v1570, -inf
        %1579 = vmax.xlane.f32.xlu0 %v1578
        %v1580 = vpop.xlane.xlu0 %1579
        %v1581 = vsel %vm1257, %v1571, -inf
        %1582 = vmax.xlane.f32.xlu0 %v1581
        %v1583 = vpop.xlane.xlu0 %1582
        %v1584 = vsub.f32 %v1568, %v1574
        %v1585 = vsub.f32 %v1569, %v1577
        %v1586 = vsub.f32 %v1570, %v1580
        %v1587 = vsub.f32 %v1571, %v1583
        %v1588 = vmul.f32 %v1584, 1.442695
        %v1589 = vpow.pop %v1588
        %v1590 = vmul.f32 %v1585, 1.442695
        %v1591 = vpow.pop %v1590
        %v1592 = vmul.f32 %v1586, 1.442695
        %v1593 = vpow.pop %v1592
        %v1594 = vmul.f32 %v1587, 1.442695
        %v1595 = vpow.pop %v1594
        %v1596 = vsel %vm1257, %v1589, 0.0
        %1597 = vadd.xlane.f32.xlu0 %v1596
        %v1598 = vpop.xlane.xlu0 %1597
        %v1599 = vsel %vm1257, %v1591, 0.0
        %1600 = vadd.xlane.f32.xlu0 %v1599
        %v1601 = vpop.xlane.xlu0 %1600
        %v1602 = vsel %vm1257, %v1593, 0.0
        %1603 = vadd.xlane.f32.xlu0 %v1602
        %v1604 = vpop.xlane.xlu0 %1603
        %v1605 = vsel %vm1257, %v1595, 0.0
        %1606 = vadd.xlane.f32.xlu0 %v1605
        %v1607 = vpop.xlane.xlu0 %1606
        %v1608 = vrcp.pop %v1598
        %v1609 = vrcp.pop %v1601
        %v1610 = vrcp.pop %v1604
        %v1611 = vrcp.pop %v1607
        %v1612 = vmul.f32 %v1589, %v1608
        %v1613 = vmul.f32 %v1591, %v1609
        %v1614 = vmul.f32 %v1593, %v1610
        %v1615 = vmul.f32 %v1595, %v1611
        %1616 = vst.msk [vmem:[%s561] sm:$0xff] %vm1257, %v1612
        %1617 = vst.msk [vmem:[%s561 + $0x8] sm:$0xff] %vm1257, %v1613
        %1618 = vst.msk [vmem:[%s561 + $0x10] sm:$0xff] %vm1257, %v1614
        %1619 = vst.msk [vmem:[%s561 + $0x18] sm:$0xff] %vm1257, %v1615
        %v1621 = vsel %vm1257, %v1612, 0
        %1623 = vmatprep.subr.mxu0 0.0
        %1624 = vmatpush1.msra.mxu0 %v1253
        %1625 = vmatprep.subr.mxu0 0.0
        %1626 = vmatpush1.msra.mxu0 0.0
        %1627 = vmatprep.subr.mxu0 0.0
        %1628 = vmatpush1.msra.mxu0 0.0
        %1629 = vmatprep.subr.mxu0 0.0
        %1630 = vmatpush1.msra.mxu0 0.0
        %1631 = vmatprep.subr.mxu0 0.0
        %1632 = vmatpush1.msra.mxu0 0.0
        %1633 = vmatprep.subr.mxu0 0.0
        %1634 = vmatpush1.msra.mxu0 0.0
        %1635 = vmatprep.subr.mxu0 0.0
        %1636 = vmatpush1.msra.mxu0 0.0
        %1637 = vmatprep.subr.mxu0 0.0
        %1638 = vmatpush1.msra.mxu0 0.0
        %1639 = vmatprep.subr.mxu0 0.0
        %1640 = vmatpush1.msra.mxu0 0.0
        %1641 = vmatprep.subr.mxu0 0.0
        %1642 = vmatpush1.msra.mxu0 0.0
        %1643 = vmatprep.subr.mxu0 0.0
        %1644 = vmatpush1.msra.mxu0 0.0
        %1645 = vmatprep.subr.mxu0 0.0
        %1646 = vmatpush1.msra.mxu0 0.0
        %1647 = vmatprep.subr.mxu0 0.0
        %1648 = vmatpush1.msra.mxu0 0.0
        %1649 = vmatprep.subr.mxu0 0.0
        %1650 = vmatpush1.msra.mxu0 0.0
        %1651 = vmatprep.subr.mxu0 0.0
        %1652 = vmatpush1.msra.mxu0 0.0
        %1653 = vmatprep.subr.mxu0 0.0
        %1654 = vmatpush1.msra.mxu0 0.0
        %1655 = vmatprep.subr.mxu0 0.0
        %1656 = vmatpush1.msra.mxu0 0.0
        %1657 = vmatprep.subr.mxu0 0.0
        %1658 = vmatpush1.msra.mxu0 0.0
        %1659 = vmatprep.subr.mxu0 0.0
        %1660 = vmatpush1.msra.mxu0 0.0
        %1661 = vmatprep.subr.mxu0 0.0
        %1662 = vmatpush1.msra.mxu0 0.0
        %1663 = vmatprep.subr.mxu0 0.0
        %1664 = vmatpush1.msra.mxu0 0.0
        %1665 = vmatprep.subr.mxu0 0.0
        %1666 = vmatpush1.msra.mxu0 0.0
        %1667 = vmatprep.subr.mxu0 0.0
        %1668 = vmatpush1.msra.mxu0 0.0
        %1669 = vmatprep.subr.mxu0 0.0
        %1670 = vmatpush1.msra.mxu0 0.0
        %1671 = vmatprep.subr.mxu0 0.0
        %1672 = vmatpush1.msra.mxu0 0.0
        %1673 = vmatprep.subr.mxu0 0.0
        %1674 = vmatpush1.msra.mxu0 0.0
        %1675 = vmatprep.subr.mxu0 0.0
        %1676 = vmatpush1.msra.mxu0 0.0
        %1677 = vmatprep.subr.mxu0 0.0
        %1678 = vmatpush1.msra.mxu0 0.0
        %1679 = vmatprep.subr.mxu0 0.0
        %1680 = vmatpush1.msra.mxu0 0.0
        %1681 = vmatprep.subr.mxu0 0.0
        %1682 = vmatpush1.msra.mxu0 0.0
        %1683 = vmatprep.subr.mxu0 0.0
        %1684 = vmatpush1.msra.mxu0 0.0
        %1685 = vmatprep.subr.mxu0 0.0
        %1686 = vmatpush1.msra.mxu0 0.0
        %1687 = vmatprep.mubr.f32.mxu0 0.0
        %1688 = vmatmul.mubr.f32.gmra.mrb[0].mxu0 %v1621
        %v1689 = vpop.f32.mrb[0].mxu0
        %v1690 = vadd.f32 0.0, %v1689
        %v1691 = vpop.f32.mrb[0].mxu0
        %1692 = vdwg.mxu0
        %v1694 = vsel %vm1257, %v1613, 0
        %1696 = vmatprep.subr.mxu0 0.0
        %1697 = vmatpush1.msra.mxu0 %v1254
        %1698 = vmatprep.subr.mxu0 0.0
        %1699 = vmatpush1.msra.mxu0 0.0
        %1700 = vmatprep.subr.mxu0 0.0
        %1701 = vmatpush1.msra.mxu0 0.0
        %1702 = vmatprep.subr.mxu0 0.0
        %1703 = vmatpush1.msra.mxu0 0.0
        %1704 = vmatprep.subr.mxu0 0.0
        %1705 = vmatpush1.msra.mxu0 0.0
        %1706 = vmatprep.subr.mxu0 0.0
        %1707 = vmatpush1.msra.mxu0 0.0
        %1708 = vmatprep.subr.mxu0 0.0
        %1709 = vmatpush1.msra.mxu0 0.0
        %1710 = vmatprep.subr.mxu0 0.0
        %1711 = vmatpush1.msra.mxu0 0.0
        %1712 = vmatprep.subr.mxu0 0.0
        %1713 = vmatpush1.msra.mxu0 0.0
        %1714 = vmatprep.subr.mxu0 0.0
        %1715 = vmatpush1.msra.mxu0 0.0
        %1716 = vmatprep.subr.mxu0 0.0
        %1717 = vmatpush1.msra.mxu0 0.0
        %1718 = vmatprep.subr.mxu0 0.0
        %1719 = vmatpush1.msra.mxu0 0.0
        %1720 = vmatprep.subr.mxu0 0.0
        %1721 = vmatpush1.msra.mxu0 0.0
        %1722 = vmatprep.subr.mxu0 0.0
        %1723 = vmatpush1.msra.mxu0 0.0
        %1724 = vmatprep.subr.mxu0 0.0
        %1725 = vmatpush1.msra.mxu0 0.0
        %1726 = vmatprep.subr.mxu0 0.0
        %1727 = vmatpush1.msra.mxu0 0.0
        %1728 = vmatprep.subr.mxu0 0.0
        %1729 = vmatpush1.msra.mxu0 0.0
        %1730 = vmatprep.subr.mxu0 0.0
        %1731 = vmatpush1.msra.mxu0 0.0
        %1732 = vmatprep.subr.mxu0 0.0
        %1733 = vmatpush1.msra.mxu0 0.0
        %1734 = vmatprep.subr.mxu0 0.0
        %1735 = vmatpush1.msra.mxu0 0.0
        %1736 = vmatprep.subr.mxu0 0.0
        %1737 = vmatpush1.msra.mxu0 0.0
        %1738 = vmatprep.subr.mxu0 0.0
        %1739 = vmatpush1.msra.mxu0 0.0
        %1740 = vmatprep.subr.mxu0 0.0
        %1741 = vmatpush1.msra.mxu0 0.0
        %1742 = vmatprep.subr.mxu0 0.0
        %1743 = vmatpush1.msra.mxu0 0.0
        %1744 = vmatprep.subr.mxu0 0.0
        %1745 = vmatpush1.msra.mxu0 0.0
        %1746 = vmatprep.subr.mxu0 0.0
        %1747 = vmatpush1.msra.mxu0 0.0
        %1748 = vmatprep.subr.mxu0 0.0
        %1749 = vmatpush1.msra.mxu0 0.0
        %1750 = vmatprep.subr.mxu0 0.0
        %1751 = vmatpush1.msra.mxu0 0.0
        %1752 = vmatprep.subr.mxu0 0.0
        %1753 = vmatpush1.msra.mxu0 0.0
        %1754 = vmatprep.subr.mxu0 0.0
        %1755 = vmatpush1.msra.mxu0 0.0
        %1756 = vmatprep.subr.mxu0 0.0
        %1757 = vmatpush1.msra.mxu0 0.0
        %1758 = vmatprep.subr.mxu0 0.0
        %1759 = vmatpush1.msra.mxu0 0.0
        %1760 = vmatprep.mubr.f32.mxu0 0.0
        %1761 = vmatmul.mubr.f32.gmra.mrb[0].mxu0 %v1694
        %v1762 = vpop.f32.mrb[0].mxu0
        %v1763 = vadd.f32 0.0, %v1762
        %v1764 = vpop.f32.mrb[0].mxu0
        %1765 = vdwg.mxu0
        %v1767 = vsel %vm1257, %v1614, 0
        %1769 = vmatprep.subr.mxu0 0.0
        %1770 = vmatpush1.msra.mxu0 %v1255
        %1771 = vmatprep.subr.mxu0 0.0
        %1772 = vmatpush1.msra.mxu0 0.0
        %1773 = vmatprep.subr.mxu0 0.0
        %1774 = vmatpush1.msra.mxu0 0.0
        %1775 = vmatprep.subr.mxu0 0.0
        %1776 = vmatpush1.msra.mxu0 0.0
        %1777 = vmatprep.subr.mxu0 0.0
        %1778 = vmatpush1.msra.mxu0 0.0
        %1779 = vmatprep.subr.mxu0 0.0
        %1780 = vmatpush1.msra.mxu0 0.0
        %1781 = vmatprep.subr.mxu0 0.0
        %1782 = vmatpush1.msra.mxu0 0.0
        %1783 = vmatprep.subr.mxu0 0.0
        %1784 = vmatpush1.msra.mxu0 0.0
        %1785 = vmatprep.subr.mxu0 0.0
        %1786 = vmatpush1.msra.mxu0 0.0
        %1787 = vmatprep.subr.mxu0 0.0
        %1788 = vmatpush1.msra.mxu0 0.0
        %1789 = vmatprep.subr.mxu0 0.0
        %1790 = vmatpush1.msra.mxu0 0.0
        %1791 = vmatprep.subr.mxu0 0.0
        %1792 = vmatpush1.msra.mxu0 0.0
        %1793 = vmatprep.subr.mxu0 0.0
        %1794 = vmatpush1.msra.mxu0 0.0
        %1795 = vmatprep.subr.mxu0 0.0
        %1796 = vmatpush1.msra.mxu0 0.0
        %1797 = vmatprep.subr.mxu0 0.0
        %1798 = vmatpush1.msra.mxu0 0.0
        %1799 = vmatprep.subr.mxu0 0.0
        %1800 = vmatpush1.msra.mxu0 0.0
        %1801 = vmatprep.subr.mxu0 0.0
        %1802 = vmatpush1.msra.mxu0 0.0
        %1803 = vmatprep.subr.mxu0 0.0
        %1804 = vmatpush1.msra.mxu0 0.0
        %1805 = vmatprep.subr.mxu0 0.0
        %1806 = vmatpush1.msra.mxu0 0.0
        %1807 = vmatprep.subr.mxu0 0.0
        %1808 = vmatpush1.msra.mxu0 0.0
        %1809 = vmatprep.subr.mxu0 0.0
        %1810 = vmatpush1.msra.mxu0 0.0
        %1811 = vmatprep.subr.mxu0 0.0
        %1812 = vmatpush1.msra.mxu0 0.0
        %1813 = vmatprep.subr.mxu0 0.0
        %1814 = vmatpush1.msra.mxu0 0.0
        %1815 = vmatprep.subr.mxu0 0.0
        %1816 = vmatpush1.msra.mxu0 0.0
        %1817 = vmatprep.subr.mxu0 0.0
        %1818 = vmatpush1.msra.mxu0 0.0
        %1819 = vmatprep.subr.mxu0 0.0
        %1820 = vmatpush1.msra.mxu0 0.0
        %1821 = vmatprep.subr.mxu0 0.0
        %1822 = vmatpush1.msra.mxu0 0.0
        %1823 = vmatprep.subr.mxu0 0.0
        %1824 = vmatpush1.msra.mxu0 0.0
        %1825 = vmatprep.subr.mxu0 0.0
        %1826 = vmatpush1.msra.mxu0 0.0
        %1827 = vmatprep.subr.mxu0 0.0
        %1828 = vmatpush1.msra.mxu0 0.0
        %1829 = vmatprep.subr.mxu0 0.0
        %1830 = vmatpush1.msra.mxu0 0.0
        %1831 = vmatprep.subr.mxu0 0.0
        %1832 = vmatpush1.msra.mxu0 0.0
        %1833 = vmatprep.mubr.f32.mxu0 0.0
        %1834 = vmatmul.mubr.f32.gmra.mrb[0].mxu0 %v1767
        %v1835 = vpop.f32.mrb[0].mxu0
        %v1836 = vadd.f32 0.0, %v1835
        %v1837 = vpop.f32.mrb[0].mxu0
        %1838 = vdwg.mxu0
        %v1840 = vsel %vm1257, %v1615, 0
        %1842 = vmatprep.subr.mxu0 0.0
        %1843 = vmatpush1.msra.mxu0 %v1256
        %1844 = vmatprep.subr.mxu0 0.0
        %1845 = vmatpush1.msra.mxu0 0.0
        %1846 = vmatprep.subr.mxu0 0.0
        %1847 = vmatpush1.msra.mxu0 0.0
        %1848 = vmatprep.subr.mxu0 0.0
        %1849 = vmatpush1.msra.mxu0 0.0
        %1850 = vmatprep.subr.mxu0 0.0
        %1851 = vmatpush1.msra.mxu0 0.0
        %1852 = vmatprep.subr.mxu0 0.0
        %1853 = vmatpush1.msra.mxu0 0.0
        %1854 = vmatprep.subr.mxu0 0.0
        %1855 = vmatpush1.msra.mxu0 0.0
        %1856 = vmatprep.subr.mxu0 0.0
        %1857 = vmatpush1.msra.mxu0 0.0
        %1858 = vmatprep.subr.mxu0 0.0
        %1859 = vmatpush1.msra.mxu0 0.0
        %1860 = vmatprep.subr.mxu0 0.0
        %1861 = vmatpush1.msra.mxu0 0.0
        %1862 = vmatprep.subr.mxu0 0.0
        %1863 = vmatpush1.msra.mxu0 0.0
        %1864 = vmatprep.subr.mxu0 0.0
        %1865 = vmatpush1.msra.mxu0 0.0
        %1866 = vmatprep.subr.mxu0 0.0
        %1867 = vmatpush1.msra.mxu0 0.0
        %1868 = vmatprep.subr.mxu0 0.0
        %1869 = vmatpush1.msra.mxu0 0.0
        %1870 = vmatprep.subr.mxu0 0.0
        %1871 = vmatpush1.msra.mxu0 0.0
        %1872 = vmatprep.subr.mxu0 0.0
        %1873 = vmatpush1.msra.mxu0 0.0
        %1874 = vmatprep.subr.mxu0 0.0
        %1875 = vmatpush1.msra.mxu0 0.0
        %1876 = vmatprep.subr.mxu0 0.0
        %1877 = vmatpush1.msra.mxu0 0.0
        %1878 = vmatprep.subr.mxu0 0.0
        %1879 = vmatpush1.msra.mxu0 0.0
        %1880 = vmatprep.subr.mxu0 0.0
        %1881 = vmatpush1.msra.mxu0 0.0
        %1882 = vmatprep.subr.mxu0 0.0
        %1883 = vmatpush1.msra.mxu0 0.0
        %1884 = vmatprep.subr.mxu0 0.0
        %1885 = vmatpush1.msra.mxu0 0.0
        %1886 = vmatprep.subr.mxu0 0.0
        %1887 = vmatpush1.msra.mxu0 0.0
        %1888 = vmatprep.subr.mxu0 0.0
        %1889 = vmatpush1.msra.mxu0 0.0
        %1890 = vmatprep.subr.mxu0 0.0
        %1891 = vmatpush1.msra.mxu0 0.0
        %1892 = vmatprep.subr.mxu0 0.0
        %1893 = vmatpush1.msra.mxu0 0.0
        %1894 = vmatprep.subr.mxu0 0.0
        %1895 = vmatpush1.msra.mxu0 0.0
        %1896 = vmatprep.subr.mxu0 0.0
        %1897 = vmatpush1.msra.mxu0 0.0
        %1898 = vmatprep.subr.mxu0 0.0
        %1899 = vmatpush1.msra.mxu0 0.0
        %1900 = vmatprep.subr.mxu0 0.0
        %1901 = vmatpush1.msra.mxu0 0.0
        %1902 = vmatprep.subr.mxu0 0.0
        %1903 = vmatpush1.msra.mxu0 0.0
        %1904 = vmatprep.subr.mxu0 0.0
        %1905 = vmatpush1.msra.mxu0 0.0
        %1906 = vmatprep.mubr.f32.mxu0 0.0
        %1907 = vmatmul.mubr.f32.gmra.mrb[0].mxu0 %v1840
        %v1908 = vpop.f32.mrb[0].mxu0
        %v1909 = vadd.f32 0.0, %v1908
        %v1910 = vpop.f32.mrb[0].mxu0
        %1911 = vdwg.mxu0
        %v1912 = vcombine.low %v1690, %v1836
        %v1913 = vcombine.high %v1690, %v1836
        %v1915 = vunpack.c.l.s4 1983009808
        %v1916 = vunpack.c.0.s8 %v1915
        %v1917 = vlaneseq
        %v1918 = vshrl.u32 %v1917, 7
        %v1919 = vsub.s32 %v1916, %v1918
        %v1920 = vrot.slane %v1912, %v1919
        %v1922 = vunpack.c.l.s4 1983009808
        %v1923 = vunpack.c.0.s8 %v1922
        %v1924 = vlaneseq
        %v1925 = vshrl.u32 %v1924, 7
        %v1926 = vsub.s32 %v1923, %v1925
        %v1927 = vrot.slane %v1913, %v1926
        %v1928 = vcombine.low %v1763, %v1909
        %v1929 = vcombine.high %v1763, %v1909
        %v1931 = vunpack.c.l.s4 1983009808
        %v1932 = vunpack.c.0.s8 %v1931
        %v1933 = vlaneseq
        %v1934 = vshrl.u32 %v1933, 7
        %v1935 = vsub.s32 %v1932, %v1934
        %v1936 = vrot.slane %v1928, %v1935
        %v1938 = vunpack.c.l.s4 1983009808
        %v1939 = vunpack.c.0.s8 %v1938
        %v1940 = vlaneseq
        %v1941 = vshrl.u32 %v1940, 7
        %v1942 = vsub.s32 %v1939, %v1941
        %v1943 = vrot.slane %v1929, %v1942
        %v1944 = vcombine.low %v1920, %v1936
        %v1945 = vcombine.high %v1920, %v1936
        %v1947 = vunpack.c.l.s4 1934713408
        %v1948 = vunpack.c.0.s8 %v1947
        %v1949 = vlaneseq
        %v1950 = vshrl.u32 %v1949, 7
        %v1951 = vsub.s32 %v1948, %v1950
        %v1952 = vrot.slane %v1944, %v1951
        %v1954 = vunpack.c.l.s4 1934713408
        %v1955 = vunpack.c.0.s8 %v1954
        %v1956 = vlaneseq
        %v1957 = vshrl.u32 %v1956, 7
        %v1958 = vsub.s32 %v1955, %v1957
        %v1959 = vrot.slane %v1945, %v1958
        %v1960 = vcombine.low %v1927, %v1943
        %v1961 = vcombine.high %v1927, %v1943
        %v1963 = vunpack.c.l.s4 1934713408
        %v1964 = vunpack.c.0.s8 %v1963
        %v1965 = vlaneseq
        %v1966 = vshrl.u32 %v1965, 7
        %v1967 = vsub.s32 %v1964, %v1966
        %v1968 = vrot.slane %v1960, %v1967
        %v1970 = vunpack.c.l.s4 1934713408
        %v1971 = vunpack.c.0.s8 %v1970
        %v1972 = vlaneseq
        %v1973 = vshrl.u32 %v1972, 7
        %v1974 = vsub.s32 %v1971, %v1973
        %v1975 = vrot.slane %v1961, %v1974
        %v1976 = vcombine.high %v1952, 0.0
        %v1977 = vcombine.high %v1959, 0.0
        %v1978 = vcombine.high %v1968, 0.0
        %v1979 = vcombine.high %v1975, 0.0
        %v1980 = vcombine.low %v1952, %v1959
        %v1982 = vunpack.c.l.s4 1983009808
        %v1983 = vunpack.c.0.s8 %v1982
        %v1984 = vlaneseq
        %v1985 = vshrl.u32 %v1984, 7
        %v1986 = vsub.s32 %v1983, %v1985
        %v1987 = vrot.slane %v1980, %v1986
        %v1988 = vcombine.low %v1976, %v1977
        %v1990 = vunpack.c.l.s4 1983009808
        %v1991 = vunpack.c.0.s8 %v1990
        %v1992 = vlaneseq
        %v1993 = vshrl.u32 %v1992, 7
        %v1994 = vsub.s32 %v1991, %v1993
        %v1995 = vrot.slane %v1988, %v1994
        %v1996 = vcombine.low %v1968, %v1975
        %v1998 = vunpack.c.l.s4 1983009808
        %v1999 = vunpack.c.0.s8 %v1998
        %v2000 = vlaneseq
        %v2001 = vshrl.u32 %v2000, 7
        %v2002 = vsub.s32 %v1999, %v2001
        %v2003 = vrot.slane %v1996, %v2002
        %v2004 = vcombine.low %v1978, %v1979
        %v2006 = vunpack.c.l.s4 1983009808
        %v2007 = vunpack.c.0.s8 %v2006
        %v2008 = vlaneseq
        %v2009 = vshrl.u32 %v2008, 7
        %v2010 = vsub.s32 %v2007, %v2009
        %v2011 = vrot.slane %v2004, %v2010
        %v2012 = vcombine.low %v1987, %v1995
        %v2013 = vcombine.high %v1987, %v1995
        %v2015 = vunpack.c.l.s4 1934713408
        %v2016 = vunpack.c.0.s8 %v2015
        %v2017 = vlaneseq
        %v2018 = vshrl.u32 %v2017, 7
        %v2019 = vsub.s32 %v2016, %v2018
        %v2020 = vrot.slane %v2012, %v2019
        %v2022 = vunpack.c.l.s4 1934713408
        %v2023 = vunpack.c.0.s8 %v2022
        %v2024 = vlaneseq
        %v2025 = vshrl.u32 %v2024, 7
        %v2026 = vsub.s32 %v2023, %v2025
        %v2027 = vrot.slane %v2013, %v2026
        %v2028 = vcombine.low %v2003, %v2011
        %v2029 = vcombine.high %v2003, %v2011
        %v2031 = vunpack.c.l.s4 1934713408
        %v2032 = vunpack.c.0.s8 %v2031
        %v2033 = vlaneseq
        %v2034 = vshrl.u32 %v2033, 7
        %v2035 = vsub.s32 %v2032, %v2034
        %v2036 = vrot.slane %v2028, %v2035
        %v2038 = vunpack.c.l.s4 1934713408
        %v2039 = vunpack.c.0.s8 %v2038
        %v2040 = vlaneseq
        %v2041 = vshrl.u32 %v2040, 7
        %v2042 = vsub.s32 %v2039, %v2041
        %v2043 = vrot.slane %v2029, %v2042
        %v2044 = vcombine.low %v2020, %v2036
        %v2045 = vcombine.high %v2020, %v2036
        %v2046 = vcombine.low %v2027, %v2043
        %v2047 = vcombine.high %v2027, %v2043
        %2049 = vrot.lane.b32.xlu0 %v2045, 8
        %v2050 = vpop.permute.xlu0 %2049
        %2053 = vrot.lane.b32.xlu0 %v2046, 16
        %v2054 = vpop.permute.xlu0 %2053
        %2057 = vrot.lane.b32.xlu0 %v2047, 24
        %v2058 = vpop.permute.xlu0 %2057
        %v2060 = vsel %vm1257, %v2044, %v2050
        %vm2061 = vcmask 130048
        %v2062 = vsel %vm2061, %v2060, %v2054
        %vm2063 = vcmask 195584
        %v2064 = vsel %vm2063, %v2062, %v2058
        %v2065 = vld [vmem:[#allocation15] sm:$0xff]
        %v2066 = vld [vmem:[#allocation15 + $0x8] sm:$0xff]
        %v2067 = vld [vmem:[#allocation15 + $0x10] sm:$0xff]
        %v2068 = vld [vmem:[#allocation15 + $0x18] sm:$0xff]
        %v2070 = vsel %vm1028, %v2064, 0
        %2072 = vmatprep.subr.mxu0 0.0
        %2073 = vmatpush1.msra.mxu0 %v2065
        %2074 = vmatprep.subr.mxu0 0.0
        %2075 = vmatpush1.msra.mxu0 %v2066
        %2076 = vmatprep.subr.mxu0 0.0
        %2077 = vmatpush1.msra.mxu0 %v2067
        %2078 = vmatprep.subr.mxu0 0.0
        %2079 = vmatpush1.msra.mxu0 %v2068
        %2080 = vmatprep.subr.mxu0 0.0
        %2081 = vmatpush1.msra.mxu0 0.0
        %2082 = vmatprep.subr.mxu0 0.0
        %2083 = vmatpush1.msra.mxu0 0.0
        %2084 = vmatprep.subr.mxu0 0.0
        %2085 = vmatpush1.msra.mxu0 0.0
        %2086 = vmatprep.subr.mxu0 0.0
        %2087 = vmatpush1.msra.mxu0 0.0
        %2088 = vmatprep.subr.mxu0 0.0
        %2089 = vmatpush1.msra.mxu0 0.0
        %2090 = vmatprep.subr.mxu0 0.0
        %2091 = vmatpush1.msra.mxu0 0.0
        %2092 = vmatprep.subr.mxu0 0.0
        %2093 = vmatpush1.msra.mxu0 0.0
        %2094 = vmatprep.subr.mxu0 0.0
        %2095 = vmatpush1.msra.mxu0 0.0
        %2096 = vmatprep.subr.mxu0 0.0
        %2097 = vmatpush1.msra.mxu0 0.0
        %2098 = vmatprep.subr.mxu0 0.0
        %2099 = vmatpush1.msra.mxu0 0.0
        %2100 = vmatprep.subr.mxu0 0.0
        %2101 = vmatpush1.msra.mxu0 0.0
        %2102 = vmatprep.subr.mxu0 0.0
        %2103 = vmatpush1.msra.mxu0 0.0
        %2104 = vmatprep.subr.mxu0 0.0
        %2105 = vmatpush1.msra.mxu0 0.0
        %2106 = vmatprep.subr.mxu0 0.0
        %2107 = vmatpush1.msra.mxu0 0.0
        %2108 = vmatprep.subr.mxu0 0.0
        %2109 = vmatpush1.msra.mxu0 0.0
        %2110 = vmatprep.subr.mxu0 0.0
        %2111 = vmatpush1.msra.mxu0 0.0
        %2112 = vmatprep.subr.mxu0 0.0
        %2113 = vmatpush1.msra.mxu0 0.0
        %2114 = vmatprep.subr.mxu0 0.0
        %2115 = vmatpush1.msra.mxu0 0.0
        %2116 = vmatprep.subr.mxu0 0.0
        %2117 = vmatpush1.msra.mxu0 0.0
        %2118 = vmatprep.subr.mxu0 0.0
        %2119 = vmatpush1.msra.mxu0 0.0
        %2120 = vmatprep.subr.mxu0 0.0
        %2121 = vmatpush1.msra.mxu0 0.0
        %2122 = vmatprep.subr.mxu0 0.0
        %2123 = vmatpush1.msra.mxu0 0.0
        %2124 = vmatprep.subr.mxu0 0.0
        %2125 = vmatpush1.msra.mxu0 0.0
        %2126 = vmatprep.subr.mxu0 0.0
        %2127 = vmatpush1.msra.mxu0 0.0
        %2128 = vmatprep.subr.mxu0 0.0
        %2129 = vmatpush1.msra.mxu0 0.0
        %2130 = vmatprep.subr.mxu0 0.0
        %2131 = vmatpush1.msra.mxu0 0.0
        %2132 = vmatprep.subr.mxu0 0.0
        %2133 = vmatpush1.msra.mxu0 0.0
        %2134 = vmatprep.subr.mxu0 0.0
        %2135 = vmatpush1.msra.mxu0 0.0
        %2136 = vmatprep.mubr.f32.mxu0 0.0
        %2137 = vmatmul.mubr.f32.gmra.mrb[0].mxu0 %v2070
        %v2138 = vpop.f32.mrb[0].mxu0
        %v2139 = vadd.f32 %v1022, %v2138
        %v2140 = vpop.f32.mrb[0].mxu0
        %2141 = vdwg.mxu0
        %v2142 = vsel %vm1028, %v2139, 0.0
        %2143 = vadd.xlane.f32.xlu0 %v2142
        %v2144 = vpop.xlane.xlu0 %2143
        %v2145 = vrcp.pop 32.0
        %v2146 = vmul.f32 %v2144, %v2145
        %v2147 = vsub.f32 %v2139, %v2146
        %v2148 = vmul.f32 %v2147, %v2147
        %v2149 = vsel %vm1028, %v2148, 0.0
        %2150 = vadd.xlane.f32.xlu0 %v2149
        %v2151 = vpop.xlane.xlu0 %2150
        %v2152 = vmul.f32 %v2151, %v2145
        %v2153 = vadd.f32 %v2152, 1e-05
        %v2154 = vrsqrt.pop %v2153
        %v2155 = vmul.f32 %v2147, %v2154
        %v2156 = vld [vmem:[#allocation16] sm:$0x1]
        %v2158 = vlaneseq
        %v2159 = vshrl.u32 %v2158, 7
        %v2160 = vsub.s32 0, %v2159
        %v2161 = vrot.slane %v2156, %v2160
        %v2163 = vmul.f32 %v2155, %v2161
        %v2164 = vld [vmem:[#allocation18] sm:$0x1]
        %v2166 = vlaneseq
        %v2167 = vshrl.u32 %v2166, 7
        %v2168 = vsub.s32 0, %v2167
        %v2169 = vrot.slane %v2164, %v2168
        %v2171 = vadd.f32 %v2163, %v2169
        %2172 = vst.msk [vmem:[%s554] sm:$0xff] %vm1028, %v2171
        %s2173 = sand.u32 %s267, 1
        %s2174 = scalar_lea.sflag [#allocation6], %s2173
        %s2175 = sand.u32 %s267, 1
        %s2176 = smul.addr %s2175, 8
        %s2177 = scalar_lea.vmem [#allocation19], %s2176
        %s2178 = sand.u32 %s295, 1
        %s2179 = scalar_lea.sflag [#allocation21], %s2178
        %s2180 = sand.u32 %s295, 1
        %s2181 = smul.addr %s2180, 32
        %s2182 = scalar_lea.vmem [#allocation20], %s2181
        // Predicated region
        $region97: #{tpu_custom_call.1} parent=55 // pred_check
          %p2183 = pneg %p277
        $region98: #{tpu_custom_call.1} parent=55 // pred_check_branch
          %2185 = sbr.rel (%p2183) target = $region100
        $region99: #{tpu_custom_call.1} parent=55 // pred_region
          %s2187 = ssub.s32 128, 128
          %2188 = vsyncadd %s2174, %s2187
          %s2189 = sadd.s32 %s42, %s41
          %s2190 = smul.addr %s2189, 128
          %s2191 = scalar_lea.hbm %s9, %s2190
          %s2193 = sshll.u32 %s2177, 4
          %s2194 = int_to_ptr.vmem [resolvable:$true] %s2193
          %2196 = dma.vmem_to_hbm [thread:$0]  %s2194, 128, %s2191, %s2174
        $region100: #{tpu_custom_call.1} parent=55 // pred_fallthru
          _
        // Predicated region
        $region101: #{tpu_custom_call.1} parent=55 // pred_check
          %p2197 = pneg %p305
        $region102: #{tpu_custom_call.1} parent=55 // pred_check_branch
          %2199 = sbr.rel (%p2197) target = $region104
        $region103: #{tpu_custom_call.1} parent=55 // pred_region
          %s2201 = ssub.s32 512, 512
          %2202 = vsyncadd %s2179, %s2201
          %s2203 = smul.addr %s41, 4
          %s2204 = sadd.s32 %s42, %s2203
          %s2205 = smul.addr %s2204, 128
          %s2206 = scalar_lea.hbm %s10, %s2205
          %s2207 = sshll.u32 %s2182, 4
          %s2208 = int_to_ptr.vmem [resolvable:$true] %s2207
          %2213 = dma.vmem_to_hbm [thread:$0]  %s2208, 512, %s2206, %s2179, 128, 128, 8
        $region104: #{tpu_custom_call.1} parent=55 // pred_fallthru
          _
      $region56: #{tpu_custom_call.1} parent=5 // pred_fallthru
        _
      %p2214 = scmp.le.s32.totalorder 2, %s32
      // Predicated region
      $region105: #{tpu_custom_call.1} parent=5 // pred_check
        %p2215 = pneg %p2214
      $region106: #{tpu_custom_call.1} parent=5 // pred_check_branch
        %2217 = sbr.rel (%p2215) target = $region108
      $region107: #{tpu_custom_call.1} parent=5 // pred_region
        %s2218 = ssub.s32 %s32, 2
        // Predicated region
        $region109: #{tpu_custom_call.1} parent=107 // pred_check
          %p2219 = pneg %p283
        $region110: #{tpu_custom_call.1} parent=107 // pred_check_branch
          %2221 = sbr.rel (%p2219) target = $region112
        $region111: #{tpu_custom_call.1} parent=107 // pred_region
          %s2222 = sand.u32 %s268, 1
          %s2223 = scalar_lea.sflag [#allocation6], %s2222
          %s2224 = sand.u32 %s268, 1
          %s2225 = smul.addr %s2224, 8
          %s2226 = scalar_lea.vmem [#allocation19], %s2225
          %2227 = dma.done %s2223, 128
        $region112: #{tpu_custom_call.1} parent=107 // pred_fallthru
          _
        // Predicated region
        $region113: #{tpu_custom_call.1} parent=107 // pred_check
          %p2228 = pneg %p311
        $region114: #{tpu_custom_call.1} parent=107 // pred_check_branch
          %2230 = sbr.rel (%p2228) target = $region116
        $region115: #{tpu_custom_call.1} parent=107 // pred_region
          %s2231 = sand.u32 %s296, 1
          %s2232 = scalar_lea.sflag [#allocation21], %s2231
          %s2233 = sand.u32 %s296, 1
          %s2234 = smul.addr %s2233, 32
          %s2235 = scalar_lea.vmem [#allocation20], %s2234
          %2236 = dma.done %s2232, 512
        $region116: #{tpu_custom_call.1} parent=107 // pred_fallthru
          _
      $region108: #{tpu_custom_call.1} parent=5 // pred_fallthru
        _
    $region6: #{tpu_custom_call.1} parent=1 // loop_footer
      %s36 = sadd.s32 1, %s32
    $region7: #{tpu_custom_call.1} parent=1 // loop_footer_branch
      %31 = sbr.rel target = $region3
    $region8: #{tpu_custom_call.1} parent=1 // loop_exit
      _
    %2237 = vsyncpa [#allocation5], 1
    %s2238 = scalar_lea.sflag [#allocation5], 1
    %2239 = vsyncpa %s2238, 1
    %2240 = vsyncpa [#allocation8], 1
    %s2241 = scalar_lea.sflag [#allocation8], 1
    %2242 = vsyncpa %s2241, 1
    %2243 = vsyncpa [#allocation11], 1
    %2244 = vsyncpa [#allocation14], 1
    %2245 = vsyncpa [#allocation17], 1
    %2246 = vsyncpa [#allocation6], 1
    %s2247 = scalar_lea.sflag [#allocation6], 1
    %2248 = vsyncpa %s2247, 1
    %2249 = vsyncpa [#allocation21], 1
    %s2250 = scalar_lea.sflag [#allocation21], 1
    %2251 = vsyncpa %s2250, 1

</llo_original>
